<compile_context>
chip_gen: v7x
topology: tpu7x:2x2x1
jax: 0.10.0
libtpu: 0.0.40
codegen_flags: <defaults>
</compile_context>

<pallas_src>
import functools

import jax
import jax.numpy as jnp
from jax.experimental import pallas as pl
from jax.experimental.pallas import tpu as pltpu

LN_EPS = 1e-5
LEAKY_SLOPE = 0.01  # torch.nn.LeakyReLU default


def _round_up(x, m):
    return (x + m - 1) // m * m


def _make_stack_kernel(num_layers, matmul_dtype):
    """Fused kernel: for one (TM, K0) tile of x, run every Fc layer in VMEM."""

    def kernel(x_ref, *refs):
        o_ref = refs[2 * num_layers]
        # Cast once inside the kernel: x is DMA'd in its original dtype, so there is
        # no separate wrapper-side convert pass over HBM.
        h = x_ref[...].astype(matmul_dtype)
        for l in range(num_layers):
            w_ref = refs[2 * l]        # (K_l, N), matmul dtype, VMEM-resident
            bgb_ref = refs[2 * l + 1]  # (3, N) f32: [bias; gamma; beta]

            # Linear on the MXU, f32 accumulate.
            acc = jnp.dot(h, w_ref[...], preferred_element_type=jnp.float32)
            acc = acc + bgb_ref[0:1, :]

            # LayerNorm, single-pass stats: mean and E[x^2] from one read of acc
            # (var = E[x^2] - mean^2, clamped at 0 before the eps'd rsqrt).
            n_inv = 1.0 / acc.shape[-1]
            mean = jnp.sum(acc, axis=-1, keepdims=True) * n_inv
            mean_sq = jnp.sum(acc * acc, axis=-1, keepdims=True) * n_inv
            var = jnp.maximum(mean_sq - mean * mean, 0.0)
            acc = (acc - mean) * jax.lax.rsqrt(var + LN_EPS)
            acc = acc * bgb_ref[1:2, :] + bgb_ref[2:3, :]

            # LeakyReLU, written through the same live f32 value (keeps the unrolled
            # epilogue's vreg footprint small -> important on v5e).
            acc = jnp.where(acc >= 0, acc, LEAKY_SLOPE * acc)

            # Cast back to the MXU input dtype only if another matmul follows.
            h = acc.astype(matmul_dtype) if l + 1 < num_layers else acc

        o_ref[...] = h.astype(o_ref.dtype)

    return kernel


def _vmem_capacity_bytes():
    try:
        return int(pltpu.get_tpu_info().vmem_capacity_bytes)
    except Exception:
        return 64 * 2 ** 20  # conservative (v7x-sized) fallback


def _choose_tile_and_vmem(M, K0, N, k_dims, x_bytes, w_bytes, out_bytes, tm_target):
    """Pick an M tile + VMEM limit.  Generation-aware and double-buffer-aware."""
    # Pallas double-buffers EVERY input by default, including the constant-index
    # weight / bgb blocks -> count two copies of all resident parameters.
    resident = 2 * sum(k * N * w_bytes for k in k_dims)
    resident += 2 * len(k_dims) * 8 * N * 4          # (3,N) f32 bgb, sublane-padded to 8

    def usage(t):
        io = 2 * t * K0 * x_bytes + 2 * t * N * out_bytes   # double-buffered x / out tiles
        work = 6 * t * N * 4                                # f32 intermediates headroom
        return resident + io + work

    vmem_cap = _vmem_capacity_bytes()                 # ~128 MiB v5e/v6e, 64 MiB v7x
    budget = int(vmem_cap * 0.75)

    tm = max(8, min(tm_target, _round_up(M, 8)))
    tm = _round_up(tm, 8)
    while tm > 8 and usage(tm) > budget:
        tm = max(8, _round_up(tm // 2, 8))

    # Megacore: v7x has 2 TensorCores and dimension_semantics=("parallel",) shards the
    # M grid across them -- keep >= 2 grid steps when the batch is big enough.
    if M >= 256 and pl.cdiv(M, tm) < 2:
        tm = max(8, _round_up(pl.cdiv(M, 2), 8))

    vmem_limit = int(min(vmem_cap * 0.95, max(32 * 2 ** 20, usage(tm) * 1.25)))
    return tm, vmem_limit


@functools.partial(jax.jit, static_argnames=("tm_target", "out_dtype"))
def fc_stack_forward(x, params, *, tm_target=512, out_dtype=None):
    """Run the whole FcStack in one fused pallas_call.

    `params` must come from prepare_params(): weights already in the matmul dtype and
    bgb in f32, so no convert ops appear inside the jitted graph.
    """
    M, K0 = x.shape
    N = params[-1]["w"].shape[1]
    L = len(params)
    k_dims = [p["w"].shape[0] for p in params]

    mm_dtype = params[0]["w"].dtype
    out_dtype = x.dtype if out_dtype is None else out_dtype

    tm, vmem_limit = _choose_tile_and_vmem(
        M, K0, N, k_dims,
        x_bytes=x.dtype.itemsize,
        w_bytes=jnp.dtype(mm_dtype).itemsize,
        out_bytes=jnp.dtype(out_dtype).itemsize,
        tm_target=tm_target)

    const_map = lambda i: (0, 0)
    in_specs = [pl.BlockSpec((tm, K0), lambda i: (i, 0))]     # x walks the M grid
    args = [x]
    for p in params:
        k_l, n_l = p["w"].shape
        in_specs.append(pl.BlockSpec((k_l, n_l), const_map))  # VMEM-resident weights
        args.append(p["w"])
        in_specs.append(pl.BlockSpec((3, n_l), const_map))    # VMEM-resident bias/gamma/beta
        args.append(p["bgb"])

    kernel = _make_stack_kernel(L, mm_dtype)
    return pl.pallas_call(
        kernel,
        out_shape=jax.ShapeDtypeStruct((M, N), out_dtype),    # unpadded; Pallas masks
        grid=(pl.cdiv(M, tm),),
        in_specs=in_specs,
        out_specs=pl.BlockSpec((tm, N), lambda i: (i, 0)),
        compiler_params=pltpu.CompilerParams(
            dimension_semantics=("parallel",),   # v7x: shard M tiles across both TCs
            vmem_limit_bytes=vmem_limit,
        ),
    )(*args)


# ----------------------------- parameters / reference -----------------------------

def init_fc_params(key, in_ch, out_ch, dtype=jnp.float32):
    """Mimics torch.nn.Linear defaults; packs bias/gamma/beta into one (3, N) array."""
    kw, kb = jax.random.split(key)
    bound = 1.0 / (in_ch ** 0.5)
    w = jax.random.uniform(kw, (in_ch, out_ch), dtype, minval=-bound, maxval=bound)
    b = jax.random.uniform(kb, (out_ch,), dtype, minval=-bound, maxval=bound)
    gamma = jnp.ones((out_ch,), dtype)
    beta = jnp.zeros((out_ch,), dtype)
    bgb = jnp.stack([b, gamma, beta], axis=0)  # (3, N)
    return dict(w=w, bgb=bgb)


def init_fc_stack(key, in_ch, out_ch, layers=2, dtype=jnp.float32):
    keys = jax.random.split(key, layers)
    params = [init_fc_params(keys[0], in_ch, out_ch, dtype)]
    for i in range(1, layers):
        params.append(init_fc_params(keys[i], out_ch, out_ch, dtype))
    return params


def prepare_params(params, use_bf16=True):
    """One-time cast OUTSIDE the jitted forward: W -> matmul dtype, bgb -> f32."""
    mm_dtype = jnp.bfloat16 if use_bf16 else jnp.float32
    return [dict(w=p["w"].astype(mm_dtype), bgb=p["bgb"].astype(jnp.float32))
            for p in params]


def _reference_forward(x, params):
    """Pure-JAX reference mirroring the kernel's dtype choices (params pre-cast)."""
    mm_dtype = params[0]["w"].dtype
    h = x
    for p in params:
        hm = jnp.dot(h.astype(mm_dtype), p["w"], preferred_element_type=jnp.float32)
        hm = hm + p["bgb"][0]
        mean = jnp.mean(hm, axis=-1, keepdims=True)
        var = jnp.mean((hm - mean) ** 2, axis=-1, keepdims=True)
        hn = (hm - mean) * jax.lax.rsqrt(var + LN_EPS)
        hn = hn * p["bgb"][1] + p["bgb"][2]
        h = jnp.where(hn >= 0, hn, LEAKY_SLOPE * hn)
    return h


# ------------------------------------- demo ---------------------------------------

if __name__ == "__main__":
    key = jax.random.PRNGKey(0)
    k_x, k_p = jax.random.split(key)

    # Small but lane-friendly shapes; exercises multi-layer fusion + the >=2-step grid.
    batch, in_ch, out_ch, layers = 384, 128, 128, 3
    x = jax.random.normal(k_x, (batch, in_ch), jnp.float32)
    raw_params = init_fc_stack(k_p, in_ch, out_ch, layers=layers)

    # f32-matmul path.
    params_f32 = prepare_params(raw_params, use_bf16=False)
    out_f32 = jax.block_until_ready(fc_stack_forward(x, params_f32))
    ref_f32 = _reference_forward(x, params_f32)
    assert out_f32.shape == (batch, out_ch)
    assert bool(jnp.allclose(out_f32, ref_f32, atol=2e-3, rtol=2e-3)), "f32 mismatch"

    # bf16-MXU path (perf config for v6e/v7x); x stays f32, cast happens in-kernel.
    params_bf16 = prepare_params(raw_params, use_bf16=True)
    out_bf16 = jax.block_until_ready(fc_stack_forward(x, params_bf16))
    ref_bf16 = _reference_forward(x, params_bf16)
    assert bool(jnp.allclose(out_bf16, ref_bf16, atol=2e-2, rtol=2e-2)), "bf16 mismatch"

    # Ragged batch + non-128 feature dims (exercises the masked partial last block).
    x_small = jax.random.normal(k_x, (77, 96), jnp.float32)
    raw_small = init_fc_stack(k_p, 96, 64, layers=2)
    params_small = prepare_params(raw_small, use_bf16=False)
    out_small = jax.block_until_ready(fc_stack_forward(x_small, params_small))
    ref_small = _reference_forward(x_small, params_small)
    assert out_small.shape == (77, 64)
    assert bool(jnp.allclose(out_small, ref_small, atol=2e-3, rtol=2e-3)), "ragged mismatch"

    print("KERNEL_OK")
</pallas_src>

<mosaic_0001>
module attributes {stable_mosaic.version = 11 : i64} {
  func.func @kernel(%arg0: i32, %arg1: memref<192x128xf32, #tpu.memory_space<vmem>>, %arg2: memref<128x128xf32, #tpu.memory_space<vmem>>, %arg3: memref<3x128xf32, #tpu.memory_space<vmem>>, %arg4: memref<128x128xf32, #tpu.memory_space<vmem>>, %arg5: memref<3x128xf32, #tpu.memory_space<vmem>>, %arg6: memref<128x128xf32, #tpu.memory_space<vmem>>, %arg7: memref<3x128xf32, #tpu.memory_space<vmem>>, %arg8: memref<192x128xf32, #tpu.memory_space<vmem>>) attributes {dimension_semantics = [#tpu.dimension_semantics<parallel>], iteration_bounds = array<i64: 2>, scalar_prefetch = 0 : i64, scratch_operands = 0 : i64, tpu.core_type = #tpu.core_type<tc>, window_params = [{transform_indices = @transform_0, window_bounds = array<i64: 192, 128>}, {pipeline_mode = #tpu.pipeline_mode<synchronous>, transform_indices = @transform_1, window_bounds = array<i64: 128, 128>}, {pipeline_mode = #tpu.pipeline_mode<synchronous>, transform_indices = @transform_2, window_bounds = array<i64: 3, 128>}, {pipeline_mode = #tpu.pipeline_mode<synchronous>, transform_indices = @transform_3, window_bounds = array<i64: 128, 128>}, {pipeline_mode = #tpu.pipeline_mode<synchronous>, transform_indices = @transform_4, window_bounds = array<i64: 3, 128>}, {pipeline_mode = #tpu.pipeline_mode<synchronous>, transform_indices = @transform_5, window_bounds = array<i64: 128, 128>}, {pipeline_mode = #tpu.pipeline_mode<synchronous>, transform_indices = @transform_6, window_bounds = array<i64: 3, 128>}, {transform_indices = @transform_7, window_bounds = array<i64: 192, 128>}]} {
    %c0 = arith.constant 0 : index
    %c0_0 = arith.constant 0 : index
    %0 = vector.load %arg1[%c0, %c0_0] : memref<192x128xf32, #tpu.memory_space<vmem>>, vector<192x128xf32>
    %c0_1 = arith.constant 0 : index
    %c0_2 = arith.constant 0 : index
    %1 = vector.load %arg2[%c0_1, %c0_2] : memref<128x128xf32, #tpu.memory_space<vmem>>, vector<128x128xf32>
    %cst = arith.constant dense<0.000000e+00> : vector<192x128xf32>
    %2 = tpu.matmul %0, %1, %cst {dimension_numbers = #tpu.dot_dimension_numbers<[1], [0], [0], [1], [0, 0, 1, 1], [], []>} : vector<192x128xf32>, vector<128x128xf32>, vector<192x128xf32> -> vector<192x128xf32>
    %c0_3 = arith.constant 0 : index
    %c0_4 = arith.constant 0 : index
    %3 = vector.load %arg3[%c0_3, %c0_4] : memref<3x128xf32, #tpu.memory_space<vmem>>, vector<1x128xf32>
    %4 = vector.broadcast %3 : vector<1x128xf32> to vector<192x128xf32>
    %5 = arith.addf %2, %4 : vector<192x128xf32>
    %cst_5 = arith.constant dense<0.000000e+00> : vector<192xf32>
    %6 = vector.multi_reduction <add>, %5, %cst_5 [1] : vector<192x128xf32> to vector<192xf32>
    %7 = vector.shape_cast %6 : vector<192xf32> to vector<192x1xf32>
    %cst_6 = arith.constant 7.812500e-03 : f32
    %8 = vector.broadcast %cst_6 : f32 to vector<192x1xf32>
    %9 = arith.mulf %7, %8 : vector<192x1xf32>
    %10 = arith.mulf %5, %5 : vector<192x128xf32>
    %cst_7 = arith.constant dense<0.000000e+00> : vector<192xf32>
    %11 = vector.multi_reduction <add>, %10, %cst_7 [1] : vector<192x128xf32> to vector<192xf32>
    %12 = vector.shape_cast %11 : vector<192xf32> to vector<192x1xf32>
    %cst_8 = arith.constant 7.812500e-03 : f32
    %13 = vector.broadcast %cst_8 : f32 to vector<192x1xf32>
    %14 = arith.mulf %12, %13 : vector<192x1xf32>
    %15 = arith.mulf %9, %9 : vector<192x1xf32>
    %16 = arith.subf %14, %15 : vector<192x1xf32>
    %cst_9 = arith.constant 0.000000e+00 : f32
    %17 = vector.broadcast %cst_9 : f32 to vector<192x1xf32>
    %18 = arith.maximumf %16, %17 : vector<192x1xf32>
    %19 = vector.broadcast %9 : vector<192x1xf32> to vector<192x128xf32>
    %20 = arith.subf %5, %19 : vector<192x128xf32>
    %cst_10 = arith.constant 9.99999974E-6 : f32
    %21 = vector.broadcast %cst_10 : f32 to vector<192x1xf32>
    %22 = arith.addf %18, %21 : vector<192x1xf32>
    %23 = math.rsqrt %22 : vector<192x1xf32>
    %24 = vector.broadcast %23 : vector<192x1xf32> to vector<192x128xf32>
    %25 = arith.mulf %20, %24 : vector<192x128xf32>
    %c1 = arith.constant 1 : index
    %c0_11 = arith.constant 0 : index
    %26 = vector.load %arg3[%c1, %c0_11] : memref<3x128xf32, #tpu.memory_space<vmem>>, vector<1x128xf32>
    %27 = vector.broadcast %26 : vector<1x128xf32> to vector<192x128xf32>
    %28 = arith.mulf %25, %27 : vector<192x128xf32>
    %c2 = arith.constant 2 : index
    %c0_12 = arith.constant 0 : index
    %29 = vector.load %arg3[%c2, %c0_12] : memref<3x128xf32, #tpu.memory_space<vmem>>, vector<1x128xf32>
    %30 = vector.broadcast %29 : vector<1x128xf32> to vector<192x128xf32>
    %31 = arith.addf %28, %30 : vector<192x128xf32>
    %cst_13 = arith.constant 0.000000e+00 : f32
    %32 = vector.broadcast %cst_13 : f32 to vector<192x128xf32>
    %33 = arith.cmpf oge, %31, %32 : vector<192x128xf32>
    %cst_14 = arith.constant 0.00999999977 : f32
    %34 = vector.broadcast %cst_14 : f32 to vector<192x128xf32>
    %35 = arith.mulf %34, %31 : vector<192x128xf32>
    %36 = arith.select %33, %31, %35 : vector<192x128xi1>, vector<192x128xf32>
    %c0_15 = arith.constant 0 : index
    %c0_16 = arith.constant 0 : index
    %37 = vector.load %arg4[%c0_15, %c0_16] : memref<128x128xf32, #tpu.memory_space<vmem>>, vector<128x128xf32>
    %cst_17 = arith.constant dense<0.000000e+00> : vector<192x128xf32>
    %38 = tpu.matmul %36, %37, %cst_17 {dimension_numbers = #tpu.dot_dimension_numbers<[1], [0], [0], [1], [0, 0, 1, 1], [], []>} : vector<192x128xf32>, vector<128x128xf32>, vector<192x128xf32> -> vector<192x128xf32>
    %c0_18 = arith.constant 0 : index
    %c0_19 = arith.constant 0 : index
    %39 = vector.load %arg5[%c0_18, %c0_19] : memref<3x128xf32, #tpu.memory_space<vmem>>, vector<1x128xf32>
    %40 = vector.broadcast %39 : vector<1x128xf32> to vector<192x128xf32>
    %41 = arith.addf %38, %40 : vector<192x128xf32>
    %cst_20 = arith.constant dense<0.000000e+00> : vector<192xf32>
    %42 = vector.multi_reduction <add>, %41, %cst_20 [1] : vector<192x128xf32> to vector<192xf32>
    %43 = vector.shape_cast %42 : vector<192xf32> to vector<192x1xf32>
    %cst_21 = arith.constant 7.812500e-03 : f32
    %44 = vector.broadcast %cst_21 : f32 to vector<192x1xf32>
    %45 = arith.mulf %43, %44 : vector<192x1xf32>
    %46 = arith.mulf %41, %41 : vector<192x128xf32>
    %cst_22 = arith.constant dense<0.000000e+00> : vector<192xf32>
    %47 = vector.multi_reduction <add>, %46, %cst_22 [1] : vector<192x128xf32> to vector<192xf32>
    %48 = vector.shape_cast %47 : vector<192xf32> to vector<192x1xf32>
    %cst_23 = arith.constant 7.812500e-03 : f32
    %49 = vector.broadcast %cst_23 : f32 to vector<192x1xf32>
    %50 = arith.mulf %48, %49 : vector<192x1xf32>
    %51 = arith.mulf %45, %45 : vector<192x1xf32>
    %52 = arith.subf %50, %51 : vector<192x1xf32>
    %cst_24 = arith.constant 0.000000e+00 : f32
    %53 = vector.broadcast %cst_24 : f32 to vector<192x1xf32>
    %54 = arith.maximumf %52, %53 : vector<192x1xf32>
    %55 = vector.broadcast %45 : vector<192x1xf32> to vector<192x128xf32>
    %56 = arith.subf %41, %55 : vector<192x128xf32>
    %cst_25 = arith.constant 9.99999974E-6 : f32
    %57 = vector.broadcast %cst_25 : f32 to vector<192x1xf32>
    %58 = arith.addf %54, %57 : vector<192x1xf32>
    %59 = math.rsqrt %58 : vector<192x1xf32>
    %60 = vector.broadcast %59 : vector<192x1xf32> to vector<192x128xf32>
    %61 = arith.mulf %56, %60 : vector<192x128xf32>
    %c1_26 = arith.constant 1 : index
    %c0_27 = arith.constant 0 : index
    %62 = vector.load %arg5[%c1_26, %c0_27] : memref<3x128xf32, #tpu.memory_space<vmem>>, vector<1x128xf32>
    %63 = vector.broadcast %62 : vector<1x128xf32> to vector<192x128xf32>
    %64 = arith.mulf %61, %63 : vector<192x128xf32>
    %c2_28 = arith.constant 2 : index
    %c0_29 = arith.constant 0 : index
    %65 = vector.load %arg5[%c2_28, %c0_29] : memref<3x128xf32, #tpu.memory_space<vmem>>, vector<1x128xf32>
    %66 = vector.broadcast %65 : vector<1x128xf32> to vector<192x128xf32>
    %67 = arith.addf %64, %66 : vector<192x128xf32>
    %cst_30 = arith.constant 0.000000e+00 : f32
    %68 = vector.broadcast %cst_30 : f32 to vector<192x128xf32>
    %69 = arith.cmpf oge, %67, %68 : vector<192x128xf32>
    %cst_31 = arith.constant 0.00999999977 : f32
    %70 = vector.broadcast %cst_31 : f32 to vector<192x128xf32>
    %71 = arith.mulf %70, %67 : vector<192x128xf32>
    %72 = arith.select %69, %67, %71 : vector<192x128xi1>, vector<192x128xf32>
    %c0_32 = arith.constant 0 : index
    %c0_33 = arith.constant 0 : index
    %73 = vector.load %arg6[%c0_32, %c0_33] : memref<128x128xf32, #tpu.memory_space<vmem>>, vector<128x128xf32>
    %cst_34 = arith.constant dense<0.000000e+00> : vector<192x128xf32>
    %74 = tpu.matmul %72, %73, %cst_34 {dimension_numbers = #tpu.dot_dimension_numbers<[1], [0], [0], [1], [0, 0, 1, 1], [], []>} : vector<192x128xf32>, vector<128x128xf32>, vector<192x128xf32> -> vector<192x128xf32>
    %c0_35 = arith.constant 0 : index
    %c0_36 = arith.constant 0 : index
    %75 = vector.load %arg7[%c0_35, %c0_36] : memref<3x128xf32, #tpu.memory_space<vmem>>, vector<1x128xf32>
    %76 = vector.broadcast %75 : vector<1x128xf32> to vector<192x128xf32>
    %77 = arith.addf %74, %76 : vector<192x128xf32>
    %cst_37 = arith.constant dense<0.000000e+00> : vector<192xf32>
    %78 = vector.multi_reduction <add>, %77, %cst_37 [1] : vector<192x128xf32> to vector<192xf32>
    %79 = vector.shape_cast %78 : vector<192xf32> to vector<192x1xf32>
    %cst_38 = arith.constant 7.812500e-03 : f32
    %80 = vector.broadcast %cst_38 : f32 to vector<192x1xf32>
    %81 = arith.mulf %79, %80 : vector<192x1xf32>
    %82 = arith.mulf %77, %77 : vector<192x128xf32>
    %cst_39 = arith.constant dense<0.000000e+00> : vector<192xf32>
    %83 = vector.multi_reduction <add>, %82, %cst_39 [1] : vector<192x128xf32> to vector<192xf32>
    %84 = vector.shape_cast %83 : vector<192xf32> to vector<192x1xf32>
    %cst_40 = arith.constant 7.812500e-03 : f32
    %85 = vector.broadcast %cst_40 : f32 to vector<192x1xf32>
    %86 = arith.mulf %84, %85 : vector<192x1xf32>
    %87 = arith.mulf %81, %81 : vector<192x1xf32>
    %88 = arith.subf %86, %87 : vector<192x1xf32>
    %cst_41 = arith.constant 0.000000e+00 : f32
    %89 = vector.broadcast %cst_41 : f32 to vector<192x1xf32>
    %90 = arith.maximumf %88, %89 : vector<192x1xf32>
    %91 = vector.broadcast %81 : vector<192x1xf32> to vector<192x128xf32>
    %92 = arith.subf %77, %91 : vector<192x128xf32>
    %cst_42 = arith.constant 9.99999974E-6 : f32
    %93 = vector.broadcast %cst_42 : f32 to vector<192x1xf32>
    %94 = arith.addf %90, %93 : vector<192x1xf32>
    %95 = math.rsqrt %94 : vector<192x1xf32>
    %96 = vector.broadcast %95 : vector<192x1xf32> to vector<192x128xf32>
    %97 = arith.mulf %92, %96 : vector<192x128xf32>
    %c1_43 = arith.constant 1 : index
    %c0_44 = arith.constant 0 : index
    %98 = vector.load %arg7[%c1_43, %c0_44] : memref<3x128xf32, #tpu.memory_space<vmem>>, vector<1x128xf32>
    %99 = vector.broadcast %98 : vector<1x128xf32> to vector<192x128xf32>
    %100 = arith.mulf %97, %99 : vector<192x128xf32>
    %c2_45 = arith.constant 2 : index
    %c0_46 = arith.constant 0 : index
    %101 = vector.load %arg7[%c2_45, %c0_46] : memref<3x128xf32, #tpu.memory_space<vmem>>, vector<1x128xf32>
    %102 = vector.broadcast %101 : vector<1x128xf32> to vector<192x128xf32>
    %103 = arith.addf %100, %102 : vector<192x128xf32>
    %cst_47 = arith.constant 0.000000e+00 : f32
    %104 = vector.broadcast %cst_47 : f32 to vector<192x128xf32>
    %105 = arith.cmpf oge, %103, %104 : vector<192x128xf32>
    %cst_48 = arith.constant 0.00999999977 : f32
    %106 = vector.broadcast %cst_48 : f32 to vector<192x128xf32>
    %107 = arith.mulf %106, %103 : vector<192x128xf32>
    %108 = arith.select %105, %103, %107 : vector<192x128xi1>, vector<192x128xf32>
    %c0_49 = arith.constant 0 : index
    %c0_50 = arith.constant 0 : index
    %109 = vector.load %arg8[%c0_49, %c0_50] : memref<192x128xf32, #tpu.memory_space<vmem>>, vector<192x128xf32>
    tpu.vector_store %arg8[%c0_49, %c0_50], %108 {strides = array<i32>} : memref<192x128xf32, #tpu.memory_space<vmem>>, vector<192x128xf32>,
    return
  }
  func.func @transform_0(%arg0: i32) -> (i32, i32) {
    %c0_i32 = arith.constant 0 : i32
    %c0_i32_0 = arith.constant 0 : i32
    return %arg0, %c0_i32 : i32, i32
  }
  func.func @transform_1(%arg0: i32) -> (i32, i32) {
    %c0_i32 = arith.constant 0 : i32
    %c0_i32_0 = arith.constant 0 : i32
    %c0_i32_1 = arith.constant 0 : i32
    return %c0_i32, %c0_i32_0 : i32, i32
  }
  func.func @transform_2(%arg0: i32) -> (i32, i32) {
    %c0_i32 = arith.constant 0 : i32
    %c0_i32_0 = arith.constant 0 : i32
    %c0_i32_1 = arith.constant 0 : i32
    return %c0_i32, %c0_i32_0 : i32, i32
  }
  func.func @transform_3(%arg0: i32) -> (i32, i32) {
    %c0_i32 = arith.constant 0 : i32
    %c0_i32_0 = arith.constant 0 : i32
    %c0_i32_1 = arith.constant 0 : i32
    return %c0_i32, %c0_i32_0 : i32, i32
  }
  func.func @transform_4(%arg0: i32) -> (i32, i32) {
    %c0_i32 = arith.constant 0 : i32
    %c0_i32_0 = arith.constant 0 : i32
    %c0_i32_1 = arith.constant 0 : i32
    return %c0_i32, %c0_i32_0 : i32, i32
  }
  func.func @transform_5(%arg0: i32) -> (i32, i32) {
    %c0_i32 = arith.constant 0 : i32
    %c0_i32_0 = arith.constant 0 : i32
    %c0_i32_1 = arith.constant 0 : i32
    return %c0_i32, %c0_i32_0 : i32, i32
  }
  func.func @transform_6(%arg0: i32) -> (i32, i32) {
    %c0_i32 = arith.constant 0 : i32
    %c0_i32_0 = arith.constant 0 : i32
    %c0_i32_1 = arith.constant 0 : i32
    return %c0_i32, %c0_i32_0 : i32, i32
  }
  func.func @transform_7(%arg0: i32) -> (i32, i32) {
    %c0_i32 = arith.constant 0 : i32
    %c0_i32_0 = arith.constant 0 : i32
    return %arg0, %c0_i32 : i32, i32
  }
}

</mosaic_0001>

<llo_original>
// kernel: fc_stack_forward.1
$region0: #{fc_stack_forward.1}
  #allocation0 [shape = 'u32[]', space=smem, size = 0x4, offset = 0x4, fixed_abs, tag = 'smem constant byte address 0x4 - core index']
  #allocation1 [shape = 'u32[144,128]{1,0:T(1,128)}', space=vmem, size = 0x12000, scoped, tag = 'internal scratch']
  %s0 = inlined_call_operand.hbm [shape: f32[384,128], index: 0, kind: input, shape index: {}]
  %s1 = inlined_call_operand.hbm [shape: f32[128,128], index: 1, kind: input, shape index: {}]
  %s2 = inlined_call_operand.hbm [shape: f32[3,128], index: 2, kind: input, shape index: {}]
  %s3 = inlined_call_operand.hbm [shape: f32[128,128], index: 3, kind: input, shape index: {}]
  %s4 = inlined_call_operand.vmem [shape: f32[3,128], index: 4, kind: input, shape index: {}]
  %s5 = inlined_call_operand.hbm [shape: f32[128,128], index: 5, kind: input, shape index: {}]
  %s6 = inlined_call_operand.vmem [shape: f32[3,128], index: 6, kind: input, shape index: {}]
  %s7 = inlined_call_operand.hbm [shape: f32[384,128], index: 7, kind: output, shape index: {}]
  %s8 = sld [smem:[#allocation0]]
  $region81: #{fc_stack_forward.1} parent=0
    _
  %s10 = ssub.s32 1, %s8
  %s11 = scalar_select 0, %s10, %s8
  $region1: #{fc_stack_forward.1} parent=0
    #allocation2 [shape = 'u8[196608]{0}', space=vmem, size = 0x30000, scoped, tag = 'input window, operand 0']
    #allocation3 [shape = 's32[2]{0}', space=sflag, size = 0x8, scoped, tag = 'scoped memory for fc_stack_forward.1']
    #allocation4 [shape = 's32[2]{0}', space=sflag, size = 0x8, scoped, tag = 'scoped memory for fc_stack_forward.1']
    #allocation5 [shape = 'u8[65536]{0}', space=vmem, size = 0x10000, scoped, tag = 'input window, operand 1, single buffered']
    #allocation6 [shape = 's32[1]{0}', space=sflag, size = 0x4, scoped, tag = 'scoped memory for fc_stack_forward.1']
    #allocation7 [shape = 'u8[2048]{0}', space=vmem, size = 0x800, scoped, tag = 'input window, operand 2, single buffered']
    #allocation8 [shape = 'u8[65536]{0}', space=vmem, size = 0x10000, scoped, tag = 'input window, operand 3, single buffered']
    #allocation9 [shape = 's32[1]{0}', space=sflag, size = 0x4, scoped, tag = 'scoped memory for fc_stack_forward.1']
    #allocation10 [shape = 'u8[65536]{0}', space=vmem, size = 0x10000, scoped, tag = 'input window, operand 5, single buffered']
    #allocation11 [shape = 'u8[196608]{0}', space=vmem, size = 0x30000, scoped, tag = 'output window, operand 0']
    %12 = vsyncpa [#allocation3], 0
    %s13 = scalar_lea.sflag [#allocation3], 1
    %14 = vsyncpa %s13, 0
    %15 = vsyncpa [#allocation6], 0
    %16 = vsyncpa [#allocation9], 0
    %17 = vsyncpa [#allocation4], 0
    %s18 = scalar_lea.sflag [#allocation4], 1
    %19 = vsyncpa %s18, 0
    loop: start=0, step=1, limit=4
    $region2: #{fc_stack_forward.1} parent=1 // loop_pre_header
      _
    $region3: #{fc_stack_forward.1} parent=1 // loop_header
      %s21 = sphi 0, %s25
      %p22 = scmp.ge.s32.totalorder %s21, 4
      %s31 = sphi 0, %s33
      %s34 = sphi 0, %s31
      %s35 = sphi 0, %s34
      %s51 = sphi 0, %s35
      %s55 = sphi 0, %s55
      %s57 = sphi 0, %s55
      %s58 = sphi 0, %s57
      %s72 = sphi 0, %s58
      %s76 = sphi 0, %s76
      %s78 = sphi 0, %s76
      %s79 = sphi 0, %s78
      %s93 = sphi 0, %s79
      %s97 = sphi 0, %s97
      %s99 = sphi 0, %s97
      %s100 = sphi 0, %s99
      %s114 = sphi 0, %s100
      %s118 = sphi 0, %s118
      %s120 = sphi 0, %s118
      %s121 = sphi 0, %s120
      %s135 = sphi 0, %s121
      %s139 = sphi 0, %s139
      %s141 = sphi 0, %s139
      %s142 = sphi 0, %s141
      %s156 = sphi 0, %s142
      %s160 = sphi 0, %s160
      %s162 = sphi 0, %s160
      %s163 = sphi 0, %s162
      %s177 = sphi 0, %s163
      %s183 = sphi 0, %s185
      %s186 = sphi 0, %s183
      %s187 = sphi 0, %s186
      %s203 = sphi 0, %s187
    $region4: #{fc_stack_forward.1} parent=1 // loop_header_branch
      %24 = sbr.rel (%p22) target = $region8
    $region5: #{fc_stack_forward.1} parent=1 // loop_body
      %s26 = ssub.s32 %s21, 1
      %s27 = ssub.s32 %s21, 2
      %s28 = sadd.s32 %s21, 1
      %s29 = ssub.s32 %s21, %s28
      %p30 = scmp.eq.s32.totalorder %s29, 0
      %s32 = sadd.s32 %s31, 1
      %s33 = scalar_select %p30, %s31, %s32
      %p36 = pneg %p30
      %p37 = scmp.eq.s32.totalorder %s21, 1
      %p38 = por %p36, %p37
      %p39 = scmp.ne.s32.totalorder %s31, %s34
      %p40 = scmp.eq.s32.totalorder %s21, 0
      %p41 = por %p39, %p40
      %p42 = scmp.ne.s32.totalorder %s31, %s34
      %p43 = scmp.eq.s32.totalorder %s26, 1
      %p44 = por %p42, %p43
      %p45 = scmp.ne.s32.totalorder %s34, %s35
      %p46 = scmp.eq.s32.totalorder %s26, 0
      %p47 = por %p45, %p46
      %p48 = scmp.ne.s32.totalorder %s34, %s35
      %p49 = scmp.eq.s32.totalorder %s27, 1
      %p50 = por %p48, %p49
      %p52 = scmp.ne.s32.totalorder %s35, %s51
      %p53 = scmp.eq.s32.totalorder %s27, 0
      %p54 = por %p52, %p53
      %s56 = sadd.s32 %s55, 1
      %p59 = scmp.eq.s32.totalorder %s21, 1
      %p60 = scmp.ne.s32.totalorder %s55, %s57
      %p61 = scmp.eq.s32.totalorder %s21, 0
      %p62 = por %p60, %p61
      %p63 = scmp.ne.s32.totalorder %s55, %s57
      %p64 = scmp.eq.s32.totalorder %s26, 1
      %p65 = por %p63, %p64
      %p66 = scmp.ne.s32.totalorder %s57, %s58
      %p67 = scmp.eq.s32.totalorder %s26, 0
      %p68 = por %p66, %p67
      %p69 = scmp.ne.s32.totalorder %s57, %s58
      %p70 = scmp.eq.s32.totalorder %s27, 1
      %p71 = por %p69, %p70
      %p73 = scmp.ne.s32.totalorder %s58, %s72
      %p74 = scmp.eq.s32.totalorder %s27, 0
      %p75 = por %p73, %p74
      %s77 = sadd.s32 %s76, 1
      %p80 = scmp.eq.s32.totalorder %s21, 1
      %p81 = scmp.ne.s32.totalorder %s76, %s78
      %p82 = scmp.eq.s32.totalorder %s21, 0
      %p83 = por %p81, %p82
      %p84 = scmp.ne.s32.totalorder %s76, %s78
      %p85 = scmp.eq.s32.totalorder %s26, 1
      %p86 = por %p84, %p85
      %p87 = scmp.ne.s32.totalorder %s78, %s79
      %p88 = scmp.eq.s32.totalorder %s26, 0
      %p89 = por %p87, %p88
      %p90 = scmp.ne.s32.totalorder %s78, %s79
      %p91 = scmp.eq.s32.totalorder %s27, 1
      %p92 = por %p90, %p91
      %p94 = scmp.ne.s32.totalorder %s79, %s93
      %p95 = scmp.eq.s32.totalorder %s27, 0
      %p96 = por %p94, %p95
      %s98 = sadd.s32 %s97, 1
      %p101 = scmp.eq.s32.totalorder %s21, 1
      %p102 = scmp.ne.s32.totalorder %s97, %s99
      %p103 = scmp.eq.s32.totalorder %s21, 0
      %p104 = por %p102, %p103
      %p105 = scmp.ne.s32.totalorder %s97, %s99
      %p106 = scmp.eq.s32.totalorder %s26, 1
      %p107 = por %p105, %p106
      %p108 = scmp.ne.s32.totalorder %s99, %s100
      %p109 = scmp.eq.s32.totalorder %s26, 0
      %p110 = por %p108, %p109
      %p111 = scmp.ne.s32.totalorder %s99, %s100
      %p112 = scmp.eq.s32.totalorder %s27, 1
      %p113 = por %p111, %p112
      %p115 = scmp.ne.s32.totalorder %s100, %s114
      %p116 = scmp.eq.s32.totalorder %s27, 0
      %p117 = por %p115, %p116
      %s119 = sadd.s32 %s118, 1
      %p122 = scmp.eq.s32.totalorder %s21, 1
      %p123 = scmp.ne.s32.totalorder %s118, %s120
      %p124 = scmp.eq.s32.totalorder %s21, 0
      %p125 = por %p123, %p124
      %p126 = scmp.ne.s32.totalorder %s118, %s120
      %p127 = scmp.eq.s32.totalorder %s26, 1
      %p128 = por %p126, %p127
      %p129 = scmp.ne.s32.totalorder %s120, %s121
      %p130 = scmp.eq.s32.totalorder %s26, 0
      %p131 = por %p129, %p130
      %p132 = scmp.ne.s32.totalorder %s120, %s121
      %p133 = scmp.eq.s32.totalorder %s27, 1
      %p134 = por %p132, %p133
      %p136 = scmp.ne.s32.totalorder %s121, %s135
      %p137 = scmp.eq.s32.totalorder %s27, 0
      %p138 = por %p136, %p137
      %s140 = sadd.s32 %s139, 1
      %p143 = scmp.eq.s32.totalorder %s21, 1
      %p144 = scmp.ne.s32.totalorder %s139, %s141
      %p145 = scmp.eq.s32.totalorder %s21, 0
      %p146 = por %p144, %p145
      %p147 = scmp.ne.s32.totalorder %s139, %s141
      %p148 = scmp.eq.s32.totalorder %s26, 1
      %p149 = por %p147, %p148
      %p150 = scmp.ne.s32.totalorder %s141, %s142
      %p151 = scmp.eq.s32.totalorder %s26, 0
      %p152 = por %p150, %p151
      %p153 = scmp.ne.s32.totalorder %s141, %s142
      %p154 = scmp.eq.s32.totalorder %s27, 1
      %p155 = por %p153, %p154
      %p157 = scmp.ne.s32.totalorder %s142, %s156
      %p158 = scmp.eq.s32.totalorder %s27, 0
      %p159 = por %p157, %p158
      %s161 = sadd.s32 %s160, 1
      %p164 = scmp.eq.s32.totalorder %s21, 1
      %p165 = scmp.ne.s32.totalorder %s160, %s162
      %p166 = scmp.eq.s32.totalorder %s21, 0
      %p167 = por %p165, %p166
      %p168 = scmp.ne.s32.totalorder %s160, %s162
      %p169 = scmp.eq.s32.totalorder %s26, 1
      %p170 = por %p168, %p169
      %p171 = scmp.ne.s32.totalorder %s162, %s163
      %p172 = scmp.eq.s32.totalorder %s26, 0
      %p173 = por %p171, %p172
      %p174 = scmp.ne.s32.totalorder %s162, %s163
      %p175 = scmp.eq.s32.totalorder %s27, 1
      %p176 = por %p174, %p175
      %p178 = scmp.ne.s32.totalorder %s163, %s177
      %p179 = scmp.eq.s32.totalorder %s27, 0
      %p180 = por %p178, %p179
      %s181 = ssub.s32 %s21, %s28
      %p182 = scmp.eq.s32.totalorder %s181, 0
      %s184 = sadd.s32 %s183, 1
      %s185 = scalar_select %p182, %s183, %s184
      %p188 = pneg %p182
      %p189 = scmp.eq.s32.totalorder %s21, 1
      %p190 = por %p188, %p189
      %p191 = scmp.ne.s32.totalorder %s183, %s186
      %p192 = scmp.eq.s32.totalorder %s21, 0
      %p193 = por %p191, %p192
      %p194 = scmp.ne.s32.totalorder %s183, %s186
      %p195 = scmp.eq.s32.totalorder %s26, 1
      %p196 = por %p194, %p195
      %p197 = scmp.ne.s32.totalorder %s186, %s187
      %p198 = scmp.eq.s32.totalorder %s26, 0
      %p199 = por %p197, %p198
      %p200 = scmp.ne.s32.totalorder %s186, %s187
      %p201 = scmp.eq.s32.totalorder %s27, 1
      %p202 = por %p200, %p201
      %p204 = scmp.ne.s32.totalorder %s187, %s203
      %p205 = scmp.eq.s32.totalorder %s27, 0
      %p206 = por %p204, %p205
      %p207 = scmp.le.s32.totalorder 1, %s21
      %p208 = scmp.lt.s32.totalorder %s21, 3
      %p209 = pnand %p207, %p208
      %p210 = pneg %p209
      // Predicated region
      $region9: #{fc_stack_forward.1} parent=5 // pred_check
        _
      $region10: #{fc_stack_forward.1} parent=5 // pred_check_branch
        %212 = sbr.rel (%p209) target = $region12
      $region11: #{fc_stack_forward.1} parent=5 // pred_region
        %s213 = ssub.s32 %s21, 1
        // Predicated region
        $region13: #{fc_stack_forward.1} parent=11 // pred_check
          %p214 = pneg %p68
        $region14: #{fc_stack_forward.1} parent=11 // pred_check_branch
          %216 = sbr.rel (%p214) target = $region16
        $region15: #{fc_stack_forward.1} parent=11 // pred_region
          %s218 = ssub.s32 2048, 2048
          %219 = vsyncadd [#allocation6], %s218
          %s220 = sshll.u32 [#allocation5], 4
          %s221 = int_to_ptr.vmem [resolvable:$true] %s220
          %226 = dma.hbm_to_vmem [thread:$0]  %s1, 2048, %s221, [#allocation6], 128, 128, 8
        $region16: #{fc_stack_forward.1} parent=11 // pred_fallthru
          _
        // Predicated region
        $region17: #{fc_stack_forward.1} parent=11 // pred_check
          %p227 = pneg %p89
        $region18: #{fc_stack_forward.1} parent=11 // pred_check_branch
          %229 = sbr.rel (%p227) target = $region20
        $region19: #{fc_stack_forward.1} parent=11 // pred_region
          %s231 = ssub.s32 64, 64
          %232 = vsyncadd [#allocation6], %s231
          %s234 = sshll.u32 [#allocation7], 4
          %s235 = int_to_ptr.vmem [resolvable:$true] %s234
          %237 = dma.hbm_to_vmem [thread:$0]  %s2, 64, %s235, [#allocation6]
        $region20: #{fc_stack_forward.1} parent=11 // pred_fallthru
          _
        // Predicated region
        $region21: #{fc_stack_forward.1} parent=11 // pred_check
          %p238 = pneg %p110
        $region22: #{fc_stack_forward.1} parent=11 // pred_check_branch
          %240 = sbr.rel (%p238) target = $region24
        $region23: #{fc_stack_forward.1} parent=11 // pred_region
          %s242 = ssub.s32 2048, 2048
          %243 = vsyncadd [#allocation9], %s242
          %s244 = sshll.u32 [#allocation8], 4
          %s245 = int_to_ptr.vmem [resolvable:$true] %s244
          %250 = dma.hbm_to_vmem [thread:$0]  %s3, 2048, %s245, [#allocation9], 128, 128, 8
        $region24: #{fc_stack_forward.1} parent=11 // pred_fallthru
          _
        // Predicated region
        $region25: #{fc_stack_forward.1} parent=11 // pred_check
          %p251 = pneg %p131
        $region26: #{fc_stack_forward.1} parent=11 // pred_check_branch
          %253 = sbr.rel (%p251) target = $region28
        $region27: #{fc_stack_forward.1} parent=11 // pred_region
          _
        $region28: #{fc_stack_forward.1} parent=11 // pred_fallthru
          _
        // Predicated region
        $region29: #{fc_stack_forward.1} parent=11 // pred_check
          %p254 = pneg %p152
        $region30: #{fc_stack_forward.1} parent=11 // pred_check_branch
          %256 = sbr.rel (%p254) target = $region32
        $region31: #{fc_stack_forward.1} parent=11 // pred_region
          %s258 = ssub.s32 2048, 2048
          %259 = vsyncadd [#allocation9], %s258
          %s260 = sshll.u32 [#allocation10], 4
          %s261 = int_to_ptr.vmem [resolvable:$true] %s260
          %266 = dma.hbm_to_vmem [thread:$0]  %s5, 2048, %s261, [#allocation9], 128, 128, 8
        $region32: #{fc_stack_forward.1} parent=11 // pred_fallthru
          _
        // Predicated region
        $region33: #{fc_stack_forward.1} parent=11 // pred_check
          %p267 = pneg %p173
        $region34: #{fc_stack_forward.1} parent=11 // pred_check_branch
          %269 = sbr.rel (%p267) target = $region36
        $region35: #{fc_stack_forward.1} parent=11 // pred_region
          _
        $region36: #{fc_stack_forward.1} parent=11 // pred_fallthru
          _
      $region12: #{fc_stack_forward.1} parent=5 // pred_fallthru
        _
      %p270 = scmp.lt.s32.totalorder %s21, 2
      // Predicated region
      $region37: #{fc_stack_forward.1} parent=5 // pred_check
        %p271 = pneg %p270
      $region38: #{fc_stack_forward.1} parent=5 // pred_check_branch
        %273 = sbr.rel (%p271) target = $region40
      $region39: #{fc_stack_forward.1} parent=5 // pred_region
        // Predicated region
        $region41: #{fc_stack_forward.1} parent=39 // pred_check
          %p274 = pneg %p41
        $region42: #{fc_stack_forward.1} parent=39 // pred_check_branch
          %276 = sbr.rel (%p274) target = $region44
        $region43: #{fc_stack_forward.1} parent=39 // pred_region
          %s277 = sand.u32 %s31, 1
          %s278 = scalar_lea.sflag [#allocation3], %s277
          %s279 = sand.u32 %s31, 1
          %s280 = smul.addr %s279, 192
          %s281 = scalar_lea.vmem [#allocation2], %s280
          %s282 = smul.u32 24, %s21
          %s284 = ssub.s32 3072, 3072
          %285 = vsyncadd %s278, %s284
          %s286 = smul.addr %s282, 128
          %s287 = scalar_lea.hbm %s0, %s286
          %s288 = sshll.u32 %s281, 4
          %s289 = int_to_ptr.vmem [resolvable:$true] %s288
          %294 = dma.hbm_to_vmem [thread:$0]  %s287, 3072, %s289, %s278, 128, 128, 8
        $region44: #{fc_stack_forward.1} parent=39 // pred_fallthru
          _
      $region40: #{fc_stack_forward.1} parent=5 // pred_fallthru
        _
      %p295 = scmp.le.s32.totalorder 1, %s21
      %p296 = scmp.lt.s32.totalorder %s21, 3
      %p297 = pnand %p295, %p296
      %p298 = pneg %p297
      // Predicated region
      $region45: #{fc_stack_forward.1} parent=5 // pred_check
        _
      $region46: #{fc_stack_forward.1} parent=5 // pred_check_branch
        %300 = sbr.rel (%p297) target = $region48
      $region47: #{fc_stack_forward.1} parent=5 // pred_region
        %s301 = ssub.s32 %s21, 1
        %s302 = sand.u32 %s34, 1
        %s303 = scalar_lea.sflag [#allocation3], %s302
        %s304 = sand.u32 %s34, 1
        %s305 = smul.addr %s304, 192
        %s306 = scalar_lea.vmem [#allocation2], %s305
        // Predicated region
        $region49: #{fc_stack_forward.1} parent=47 // pred_check
          %p307 = pneg %p47
        $region50: #{fc_stack_forward.1} parent=47 // pred_check_branch
          %309 = sbr.rel (%p307) target = $region52
        $region51: #{fc_stack_forward.1} parent=47 // pred_region
          %310 = dma.done %s303, 3072
        $region52: #{fc_stack_forward.1} parent=47 // pred_fallthru
          _
        // Predicated region
        $region53: #{fc_stack_forward.1} parent=47 // pred_check
          %p311 = pneg %p68
        $region54: #{fc_stack_forward.1} parent=47 // pred_check_branch
          %313 = sbr.rel (%p311) target = $region56
        $region55: #{fc_stack_forward.1} parent=47 // pred_region
          %314 = dma.done [#allocation6], 2048
        $region56: #{fc_stack_forward.1} parent=47 // pred_fallthru
          _
        // Predicated region
        $region57: #{fc_stack_forward.1} parent=47 // pred_check
          %p315 = pneg %p89
        $region58: #{fc_stack_forward.1} parent=47 // pred_check_branch
          %317 = sbr.rel (%p315) target = $region60
        $region59: #{fc_stack_forward.1} parent=47 // pred_region
          %318 = dma.done [#allocation6], 64
        $region60: #{fc_stack_forward.1} parent=47 // pred_fallthru
          _
        // Predicated region
        $region61: #{fc_stack_forward.1} parent=47 // pred_check
          %p319 = pneg %p110
        $region62: #{fc_stack_forward.1} parent=47 // pred_check_branch
          %321 = sbr.rel (%p319) target = $region64
        $region63: #{fc_stack_forward.1} parent=47 // pred_region
          %322 = dma.done [#allocation9], 2048
        $region64: #{fc_stack_forward.1} parent=47 // pred_fallthru
          _
        // Predicated region
        $region65: #{fc_stack_forward.1} parent=47 // pred_check
          %p323 = pneg %p152
        $region66: #{fc_stack_forward.1} parent=47 // pred_check_branch
          %325 = sbr.rel (%p323) target = $region68
        $region67: #{fc_stack_forward.1} parent=47 // pred_region
          %326 = dma.done [#allocation9], 2048
        $region68: #{fc_stack_forward.1} parent=47 // pred_fallthru
          _
        %s327 = sand.u32 %s34, 1
        %s328 = scalar_lea.sflag [#allocation3], %s327
        %s329 = sand.u32 %s34, 1
        %s330 = smul.addr %s329, 192
        %s331 = scalar_lea.vmem [#allocation2], %s330
        %p332 = pneg %p47
        %p333 = pneg %p44
        %p334 = pneg %p68
        %p335 = pneg %p65
        %p336 = pneg %p89
        %p337 = pneg %p86
        %p338 = pneg %p110
        %p339 = pneg %p107
        %p340 = pneg %p131
        %p341 = pneg %p128
        %p342 = pneg %p152
        %p343 = pneg %p149
        %p344 = pneg %p173
        %p345 = pneg %p170
        %p346 = pneg %p199
        %p347 = pneg %p196
        %s348 = sand.u32 %s186, 1
        %s349 = scalar_lea.sflag [#allocation4], %s348
        %s350 = sand.u32 %s186, 1
        %s351 = smul.addr %s350, 192
        %s352 = scalar_lea.vmem [#allocation11], %s351
        %s353 = smul.u32 24, %s26
        %s354 = smul.u32 24, %s26
        %v355 = vld [vmem:[%s306] sm:$0xff]
        %v356 = vld [vmem:[%s306 + $0x8] sm:$0xff]
        %v357 = vld [vmem:[%s306 + $0x10] sm:$0xff]
        %v358 = vld [vmem:[%s306 + $0x18] sm:$0xff]
        %v359 = vld [vmem:[%s306 + $0x20] sm:$0xff]
        %v360 = vld [vmem:[%s306 + $0x28] sm:$0xff]
        %v361 = vld [vmem:[%s306 + $0x30] sm:$0xff]
        %v362 = vld [vmem:[%s306 + $0x38] sm:$0xff]
        %v363 = vld [vmem:[%s306 + $0x40] sm:$0xff]
        %v364 = vld [vmem:[%s306 + $0x48] sm:$0xff]
        %v365 = vld [vmem:[%s306 + $0x50] sm:$0xff]
        %v366 = vld [vmem:[%s306 + $0x58] sm:$0xff]
        %v367 = vld [vmem:[%s306 + $0x60] sm:$0xff]
        %v368 = vld [vmem:[%s306 + $0x68] sm:$0xff]
        %v369 = vld [vmem:[%s306 + $0x70] sm:$0xff]
        %v370 = vld [vmem:[%s306 + $0x78] sm:$0xff]
        %v371 = vld [vmem:[%s306 + $0x80] sm:$0xff]
        %v372 = vld [vmem:[%s306 + $0x88] sm:$0xff]
        %v373 = vld [vmem:[%s306 + $0x90] sm:$0xff]
        %v374 = vld [vmem:[%s306 + $0x98] sm:$0xff]
        %v375 = vld [vmem:[%s306 + $0xa0] sm:$0xff]
        %v376 = vld [vmem:[%s306 + $0xa8] sm:$0xff]
        %v377 = vld [vmem:[%s306 + $0xb0] sm:$0xff]
        %v378 = vld [vmem:[%s306 + $0xb8] sm:$0xff]
        %v379 = vld [vmem:[#allocation5] sm:$0xff]
        %v380 = vld [vmem:[#allocation5 + $0x8] sm:$0xff]
        %v381 = vld [vmem:[#allocation5 + $0x10] sm:$0xff]
        %v382 = vld [vmem:[#allocation5 + $0x18] sm:$0xff]
        %v383 = vld [vmem:[#allocation5 + $0x20] sm:$0xff]
        %v384 = vld [vmem:[#allocation5 + $0x28] sm:$0xff]
        %v385 = vld [vmem:[#allocation5 + $0x30] sm:$0xff]
        %v386 = vld [vmem:[#allocation5 + $0x38] sm:$0xff]
        %v387 = vld [vmem:[#allocation5 + $0x40] sm:$0xff]
        %v388 = vld [vmem:[#allocation5 + $0x48] sm:$0xff]
        %v389 = vld [vmem:[#allocation5 + $0x50] sm:$0xff]
        %v390 = vld [vmem:[#allocation5 + $0x58] sm:$0xff]
        %v391 = vld [vmem:[#allocation5 + $0x60] sm:$0xff]
        %v392 = vld [vmem:[#allocation5 + $0x68] sm:$0xff]
        %v393 = vld [vmem:[#allocation5 + $0x70] sm:$0xff]
        %v394 = vld [vmem:[#allocation5 + $0x78] sm:$0xff]
        %v395 = vld [vmem:[#allocation7] sm:$0x1]
        %v396 = vlaneseq
        %v397 = vshrl.u32 %v396, 7
        %v398 = vsub.s32 0, %v397
        %v399 = vrot.slane %v395, %v398
        %400 = vmatprep.subr.mxu0 0.0
        %401 = vmatpush1.msra.mxu0 %v379
        %402 = vmatprep.subr.mxu0 0.0
        %403 = vmatpush1.msra.mxu0 %v380
        %404 = vmatprep.subr.mxu0 0.0
        %405 = vmatpush1.msra.mxu0 %v381
        %406 = vmatprep.subr.mxu0 0.0
        %407 = vmatpush1.msra.mxu0 %v382
        %408 = vmatprep.subr.mxu0 0.0
        %409 = vmatpush1.msra.mxu0 %v383
        %410 = vmatprep.subr.mxu0 0.0
        %411 = vmatpush1.msra.mxu0 %v384
        %412 = vmatprep.subr.mxu0 0.0
        %413 = vmatpush1.msra.mxu0 %v385
        %414 = vmatprep.subr.mxu0 0.0
        %415 = vmatpush1.msra.mxu0 %v386
        %416 = vmatprep.subr.mxu0 0.0
        %417 = vmatpush1.msra.mxu0 %v387
        %418 = vmatprep.subr.mxu0 0.0
        %419 = vmatpush1.msra.mxu0 %v388
        %420 = vmatprep.subr.mxu0 0.0
        %421 = vmatpush1.msra.mxu0 %v389
        %422 = vmatprep.subr.mxu0 0.0
        %423 = vmatpush1.msra.mxu0 %v390
        %424 = vmatprep.subr.mxu0 0.0
        %425 = vmatpush1.msra.mxu0 %v391
        %426 = vmatprep.subr.mxu0 0.0
        %427 = vmatpush1.msra.mxu0 %v392
        %428 = vmatprep.subr.mxu0 0.0
        %429 = vmatpush1.msra.mxu0 %v393
        %430 = vmatprep.subr.mxu0 0.0
        %431 = vmatpush1.msra.mxu0 %v394
        %432 = vmatprep.subr.mxu0 0.0
        %433 = vmatpush1.msra.mxu0 0.0
        %434 = vmatprep.subr.mxu0 0.0
        %435 = vmatpush1.msra.mxu0 0.0
        %436 = vmatprep.subr.mxu0 0.0
        %437 = vmatpush1.msra.mxu0 0.0
        %438 = vmatprep.subr.mxu0 0.0
        %439 = vmatpush1.msra.mxu0 0.0
        %440 = vmatprep.subr.mxu0 0.0
        %441 = vmatpush1.msra.mxu0 0.0
        %442 = vmatprep.subr.mxu0 0.0
        %443 = vmatpush1.msra.mxu0 0.0
        %444 = vmatprep.subr.mxu0 0.0
        %445 = vmatpush1.msra.mxu0 0.0
        %446 = vmatprep.subr.mxu0 0.0
        %447 = vmatpush1.msra.mxu0 0.0
        %448 = vmatprep.subr.mxu0 0.0
        %449 = vmatpush1.msra.mxu0 0.0
        %450 = vmatprep.subr.mxu0 0.0
        %451 = vmatpush1.msra.mxu0 0.0
        %452 = vmatprep.subr.mxu0 0.0
        %453 = vmatpush1.msra.mxu0 0.0
        %454 = vmatprep.subr.mxu0 0.0
        %455 = vmatpush1.msra.mxu0 0.0
        %456 = vmatprep.subr.mxu0 0.0
        %457 = vmatpush1.msra.mxu0 0.0
        %458 = vmatprep.subr.mxu0 0.0
        %459 = vmatpush1.msra.mxu0 0.0
        %460 = vmatprep.subr.mxu0 0.0
        %461 = vmatpush1.msra.mxu0 0.0
        %462 = vmatprep.subr.mxu0 0.0
        %463 = vmatpush1.msra.mxu0 0.0
        %464 = vmatprep.mubr.f32.mxu0 0.0
        %465 = vmatmul.mubr.f32.gmra.mrb[0].mxu0 %v355
        %v466 = vpop.f32.mrb[0].mxu0
        %v467 = vadd.f32 %v399, %v466
        %v468 = vpop.f32.mrb[0].mxu0
        %469 = vmatprep.mubr.f32.mxu0 0.0
        %470 = vmatmul.mubr.f32.gmra.mrb[0].mxu0 %v356
        %v471 = vpop.f32.mrb[0].mxu0
        %v472 = vadd.f32 %v399, %v471
        %v473 = vpop.f32.mrb[0].mxu0
        %474 = vmatprep.mubr.f32.mxu0 0.0
        %475 = vmatmul.mubr.f32.gmra.mrb[0].mxu0 %v357
        %v476 = vpop.f32.mrb[0].mxu0
        %v477 = vadd.f32 %v399, %v476
        %v478 = vpop.f32.mrb[0].mxu0
        %479 = vmatprep.mubr.f32.mxu0 0.0
        %480 = vmatmul.mubr.f32.gmra.mrb[0].mxu0 %v358
        %v481 = vpop.f32.mrb[0].mxu0
        %v482 = vadd.f32 %v399, %v481
        %v483 = vpop.f32.mrb[0].mxu0
        %484 = vmatprep.mubr.f32.mxu0 0.0
        %485 = vmatmul.mubr.f32.gmra.mrb[0].mxu0 %v359
        %v486 = vpop.f32.mrb[0].mxu0
        %v487 = vadd.f32 %v399, %v486
        %v488 = vpop.f32.mrb[0].mxu0
        %489 = vmatprep.mubr.f32.mxu0 0.0
        %490 = vmatmul.mubr.f32.gmra.mrb[0].mxu0 %v360
        %v491 = vpop.f32.mrb[0].mxu0
        %v492 = vadd.f32 %v399, %v491
        %v493 = vpop.f32.mrb[0].mxu0
        %494 = vmatprep.mubr.f32.mxu0 0.0
        %495 = vmatmul.mubr.f32.gmra.mrb[0].mxu0 %v361
        %v496 = vpop.f32.mrb[0].mxu0
        %v497 = vadd.f32 %v399, %v496
        %v498 = vpop.f32.mrb[0].mxu0
        %499 = vmatprep.mubr.f32.mxu0 0.0
        %500 = vmatmul.mubr.f32.gmra.mrb[0].mxu0 %v362
        %v501 = vpop.f32.mrb[0].mxu0
        %v502 = vadd.f32 %v399, %v501
        %v503 = vpop.f32.mrb[0].mxu0
        %504 = vmatprep.mubr.f32.mxu0 0.0
        %505 = vmatmul.mubr.f32.gmra.mrb[0].mxu0 %v363
        %v506 = vpop.f32.mrb[0].mxu0
        %v507 = vadd.f32 %v399, %v506
        %v508 = vpop.f32.mrb[0].mxu0
        %509 = vmatprep.mubr.f32.mxu0 0.0
        %510 = vmatmul.mubr.f32.gmra.mrb[0].mxu0 %v364
        %v511 = vpop.f32.mrb[0].mxu0
        %v512 = vadd.f32 %v399, %v511
        %v513 = vpop.f32.mrb[0].mxu0
        %514 = vmatprep.mubr.f32.mxu0 0.0
        %515 = vmatmul.mubr.f32.gmra.mrb[0].mxu0 %v365
        %v516 = vpop.f32.mrb[0].mxu0
        %v517 = vadd.f32 %v399, %v516
        %v518 = vpop.f32.mrb[0].mxu0
        %519 = vmatprep.mubr.f32.mxu0 0.0
        %520 = vmatmul.mubr.f32.gmra.mrb[0].mxu0 %v366
        %v521 = vpop.f32.mrb[0].mxu0
        %v522 = vadd.f32 %v399, %v521
        %v523 = vpop.f32.mrb[0].mxu0
        %524 = vmatprep.mubr.f32.mxu0 0.0
        %525 = vmatmul.mubr.f32.gmra.mrb[0].mxu0 %v367
        %v526 = vpop.f32.mrb[0].mxu0
        %v527 = vadd.f32 %v399, %v526
        %v528 = vpop.f32.mrb[0].mxu0
        %529 = vmatprep.mubr.f32.mxu0 0.0
        %530 = vmatmul.mubr.f32.gmra.mrb[0].mxu0 %v368
        %v531 = vpop.f32.mrb[0].mxu0
        %v532 = vadd.f32 %v399, %v531
        %v533 = vpop.f32.mrb[0].mxu0
        %534 = vmatprep.mubr.f32.mxu0 0.0
        %535 = vmatmul.mubr.f32.gmra.mrb[0].mxu0 %v369
        %v536 = vpop.f32.mrb[0].mxu0
        %v537 = vadd.f32 %v399, %v536
        %v538 = vpop.f32.mrb[0].mxu0
        %539 = vmatprep.mubr.f32.mxu0 0.0
        %540 = vmatmul.mubr.f32.gmra.mrb[0].mxu0 %v370
        %v541 = vpop.f32.mrb[0].mxu0
        %v542 = vadd.f32 %v399, %v541
        %v543 = vpop.f32.mrb[0].mxu0
        %544 = vmatprep.mubr.f32.mxu0 0.0
        %545 = vmatmul.mubr.f32.gmra.mrb[0].mxu0 %v371
        %v546 = vpop.f32.mrb[0].mxu0
        %v547 = vadd.f32 %v399, %v546
        %v548 = vpop.f32.mrb[0].mxu0
        %549 = vmatprep.mubr.f32.mxu0 0.0
        %550 = vmatmul.mubr.f32.gmra.mrb[0].mxu0 %v372
        %v551 = vpop.f32.mrb[0].mxu0
        %v552 = vadd.f32 %v399, %v551
        %v553 = vpop.f32.mrb[0].mxu0
        %554 = vmatprep.mubr.f32.mxu0 0.0
        %555 = vmatmul.mubr.f32.gmra.mrb[0].mxu0 %v373
        %v556 = vpop.f32.mrb[0].mxu0
        %v557 = vadd.f32 %v399, %v556
        %v558 = vpop.f32.mrb[0].mxu0
        %559 = vmatprep.mubr.f32.mxu0 0.0
        %560 = vmatmul.mubr.f32.gmra.mrb[0].mxu0 %v374
        %v561 = vpop.f32.mrb[0].mxu0
        %v562 = vadd.f32 %v399, %v561
        %v563 = vpop.f32.mrb[0].mxu0
        %564 = vmatprep.mubr.f32.mxu0 0.0
        %565 = vmatmul.mubr.f32.gmra.mrb[0].mxu0 %v375
        %v566 = vpop.f32.mrb[0].mxu0
        %v567 = vadd.f32 %v399, %v566
        %v568 = vpop.f32.mrb[0].mxu0
        %569 = vmatprep.mubr.f32.mxu0 0.0
        %570 = vmatmul.mubr.f32.gmra.mrb[0].mxu0 %v376
        %v571 = vpop.f32.mrb[0].mxu0
        %v572 = vadd.f32 %v399, %v571
        %v573 = vpop.f32.mrb[0].mxu0
        %574 = vmatprep.mubr.f32.mxu0 0.0
        %575 = vmatmul.mubr.f32.gmra.mrb[0].mxu0 %v377
        %v576 = vpop.f32.mrb[0].mxu0
        %v577 = vadd.f32 %v399, %v576
        %v578 = vpop.f32.mrb[0].mxu0
        %579 = vmatprep.mubr.f32.mxu0 0.0
        %580 = vmatmul.mubr.f32.gmra.mrb[0].mxu0 %v378
        %v581 = vpop.f32.mrb[0].mxu0
        %v582 = vadd.f32 %v399, %v581
        %v583 = vpop.f32.mrb[0].mxu0
        %584 = vdwg.mxu0
        %585 = vadd.xlane.f32.xlu0 %v467
        %v586 = vpop.xlane.xlu0 %585
        %587 = vadd.xlane.f32.xlu0 %v472
        %v588 = vpop.xlane.xlu0 %587
        %589 = vadd.xlane.f32.xlu0 %v477
        %v590 = vpop.xlane.xlu0 %589
        %591 = vadd.xlane.f32.xlu0 %v482
        %v592 = vpop.xlane.xlu0 %591
        %593 = vadd.xlane.f32.xlu0 %v487
        %v594 = vpop.xlane.xlu0 %593
        %595 = vadd.xlane.f32.xlu0 %v492
        %v596 = vpop.xlane.xlu0 %595
        %597 = vadd.xlane.f32.xlu0 %v497
        %v598 = vpop.xlane.xlu0 %597
        %599 = vadd.xlane.f32.xlu0 %v502
        %v600 = vpop.xlane.xlu0 %599
        %601 = vadd.xlane.f32.xlu0 %v507
        %v602 = vpop.xlane.xlu0 %601
        %603 = vadd.xlane.f32.xlu0 %v512
        %v604 = vpop.xlane.xlu0 %603
        %605 = vadd.xlane.f32.xlu0 %v517
        %v606 = vpop.xlane.xlu0 %605
        %607 = vadd.xlane.f32.xlu0 %v522
        %v608 = vpop.xlane.xlu0 %607
        %609 = vadd.xlane.f32.xlu0 %v527
        %v610 = vpop.xlane.xlu0 %609
        %611 = vadd.xlane.f32.xlu0 %v532
        %v612 = vpop.xlane.xlu0 %611
        %613 = vadd.xlane.f32.xlu0 %v537
        %v614 = vpop.xlane.xlu0 %613
        %615 = vadd.xlane.f32.xlu0 %v542
        %v616 = vpop.xlane.xlu0 %615
        %617 = vadd.xlane.f32.xlu0 %v547
        %v618 = vpop.xlane.xlu0 %617
        %619 = vadd.xlane.f32.xlu0 %v552
        %v620 = vpop.xlane.xlu0 %619
        %621 = vadd.xlane.f32.xlu0 %v557
        %v622 = vpop.xlane.xlu0 %621
        %623 = vadd.xlane.f32.xlu0 %v562
        %v624 = vpop.xlane.xlu0 %623
        %625 = vadd.xlane.f32.xlu0 %v567
        %v626 = vpop.xlane.xlu0 %625
        %627 = vadd.xlane.f32.xlu0 %v572
        %v628 = vpop.xlane.xlu0 %627
        %629 = vadd.xlane.f32.xlu0 %v577
        %v630 = vpop.xlane.xlu0 %629
        %631 = vadd.xlane.f32.xlu0 %v582
        %v632 = vpop.xlane.xlu0 %631
        %v633 = vmul.f32 %v586, 0.0078125
        %v634 = vmul.f32 %v588, 0.0078125
        %v635 = vmul.f32 %v590, 0.0078125
        %v636 = vmul.f32 %v592, 0.0078125
        %v637 = vmul.f32 %v594, 0.0078125
        %v638 = vmul.f32 %v596, 0.0078125
        %v639 = vmul.f32 %v598, 0.0078125
        %v640 = vmul.f32 %v600, 0.0078125
        %v641 = vmul.f32 %v602, 0.0078125
        %v642 = vmul.f32 %v604, 0.0078125
        %v643 = vmul.f32 %v606, 0.0078125
        %v644 = vmul.f32 %v608, 0.0078125
        %v645 = vmul.f32 %v610, 0.0078125
        %v646 = vmul.f32 %v612, 0.0078125
        %v647 = vmul.f32 %v614, 0.0078125
        %v648 = vmul.f32 %v616, 0.0078125
        %v649 = vmul.f32 %v618, 0.0078125
        %v650 = vmul.f32 %v620, 0.0078125
        %v651 = vmul.f32 %v622, 0.0078125
        %v652 = vmul.f32 %v624, 0.0078125
        %v653 = vmul.f32 %v626, 0.0078125
        %v654 = vmul.f32 %v628, 0.0078125
        %v655 = vmul.f32 %v630, 0.0078125
        %v656 = vmul.f32 %v632, 0.0078125
        %v657 = vmul.f32 %v467, %v467
        %v658 = vmul.f32 %v472, %v472
        %v659 = vmul.f32 %v477, %v477
        %v660 = vmul.f32 %v482, %v482
        %v661 = vmul.f32 %v487, %v487
        %v662 = vmul.f32 %v492, %v492
        %v663 = vmul.f32 %v497, %v497
        %v664 = vmul.f32 %v502, %v502
        %v665 = vmul.f32 %v507, %v507
        %v666 = vmul.f32 %v512, %v512
        %v667 = vmul.f32 %v517, %v517
        %v668 = vmul.f32 %v522, %v522
        %v669 = vmul.f32 %v527, %v527
        %v670 = vmul.f32 %v532, %v532
        %v671 = vmul.f32 %v537, %v537
        %v672 = vmul.f32 %v542, %v542
        %v673 = vmul.f32 %v547, %v547
        %v674 = vmul.f32 %v552, %v552
        %v675 = vmul.f32 %v557, %v557
        %v676 = vmul.f32 %v562, %v562
        %v677 = vmul.f32 %v567, %v567
        %v678 = vmul.f32 %v572, %v572
        %v679 = vmul.f32 %v577, %v577
        %v680 = vmul.f32 %v582, %v582
        %681 = vadd.xlane.f32.xlu0 %v657
        %v682 = vpop.xlane.xlu0 %681
        %683 = vadd.xlane.f32.xlu0 %v658
        %v684 = vpop.xlane.xlu0 %683
        %685 = vadd.xlane.f32.xlu0 %v659
        %v686 = vpop.xlane.xlu0 %685
        %687 = vadd.xlane.f32.xlu0 %v660
        %v688 = vpop.xlane.xlu0 %687
        %689 = vadd.xlane.f32.xlu0 %v661
        %v690 = vpop.xlane.xlu0 %689
        %691 = vadd.xlane.f32.xlu0 %v662
        %v692 = vpop.xlane.xlu0 %691
        %693 = vadd.xlane.f32.xlu0 %v663
        %v694 = vpop.xlane.xlu0 %693
        %695 = vadd.xlane.f32.xlu0 %v664
        %v696 = vpop.xlane.xlu0 %695
        %697 = vadd.xlane.f32.xlu0 %v665
        %v698 = vpop.xlane.xlu0 %697
        %699 = vadd.xlane.f32.xlu0 %v666
        %v700 = vpop.xlane.xlu0 %699
        %701 = vadd.xlane.f32.xlu0 %v667
        %v702 = vpop.xlane.xlu0 %701
        %703 = vadd.xlane.f32.xlu0 %v668
        %v704 = vpop.xlane.xlu0 %703
        %705 = vadd.xlane.f32.xlu0 %v669
        %v706 = vpop.xlane.xlu0 %705
        %707 = vadd.xlane.f32.xlu0 %v670
        %v708 = vpop.xlane.xlu0 %707
        %709 = vadd.xlane.f32.xlu0 %v671
        %v710 = vpop.xlane.xlu0 %709
        %711 = vadd.xlane.f32.xlu0 %v672
        %v712 = vpop.xlane.xlu0 %711
        %713 = vadd.xlane.f32.xlu0 %v673
        %v714 = vpop.xlane.xlu0 %713
        %715 = vadd.xlane.f32.xlu0 %v674
        %v716 = vpop.xlane.xlu0 %715
        %717 = vadd.xlane.f32.xlu0 %v675
        %v718 = vpop.xlane.xlu0 %717
        %719 = vadd.xlane.f32.xlu0 %v676
        %v720 = vpop.xlane.xlu0 %719
        %721 = vadd.xlane.f32.xlu0 %v677
        %v722 = vpop.xlane.xlu0 %721
        %723 = vadd.xlane.f32.xlu0 %v678
        %v724 = vpop.xlane.xlu0 %723
        %725 = vadd.xlane.f32.xlu0 %v679
        %v726 = vpop.xlane.xlu0 %725
        %727 = vadd.xlane.f32.xlu0 %v680
        %v728 = vpop.xlane.xlu0 %727
        %v729 = vmul.f32 %v682, 0.0078125
        %v730 = vmul.f32 %v684, 0.0078125
        %v731 = vmul.f32 %v686, 0.0078125
        %v732 = vmul.f32 %v688, 0.0078125
        %v733 = vmul.f32 %v690, 0.0078125
        %v734 = vmul.f32 %v692, 0.0078125
        %v735 = vmul.f32 %v694, 0.0078125
        %v736 = vmul.f32 %v696, 0.0078125
        %v737 = vmul.f32 %v698, 0.0078125
        %v738 = vmul.f32 %v700, 0.0078125
        %v739 = vmul.f32 %v702, 0.0078125
        %v740 = vmul.f32 %v704, 0.0078125
        %v741 = vmul.f32 %v706, 0.0078125
        %v742 = vmul.f32 %v708, 0.0078125
        %v743 = vmul.f32 %v710, 0.0078125
        %v744 = vmul.f32 %v712, 0.0078125
        %v745 = vmul.f32 %v714, 0.0078125
        %v746 = vmul.f32 %v716, 0.0078125
        %v747 = vmul.f32 %v718, 0.0078125
        %v748 = vmul.f32 %v720, 0.0078125
        %v749 = vmul.f32 %v722, 0.0078125
        %v750 = vmul.f32 %v724, 0.0078125
        %v751 = vmul.f32 %v726, 0.0078125
        %v752 = vmul.f32 %v728, 0.0078125
        %v753 = vmul.f32 %v633, %v633
        %v754 = vmul.f32 %v634, %v634
        %v755 = vmul.f32 %v635, %v635
        %v756 = vmul.f32 %v636, %v636
        %v757 = vmul.f32 %v637, %v637
        %v758 = vmul.f32 %v638, %v638
        %v759 = vmul.f32 %v639, %v639
        %v760 = vmul.f32 %v640, %v640
        %v761 = vmul.f32 %v641, %v641
        %v762 = vmul.f32 %v642, %v642
        %v763 = vmul.f32 %v643, %v643
        %v764 = vmul.f32 %v644, %v644
        %v765 = vmul.f32 %v645, %v645
        %v766 = vmul.f32 %v646, %v646
        %v767 = vmul.f32 %v647, %v647
        %v768 = vmul.f32 %v648, %v648
        %v769 = vmul.f32 %v649, %v649
        %v770 = vmul.f32 %v650, %v650
        %v771 = vmul.f32 %v651, %v651
        %v772 = vmul.f32 %v652, %v652
        %v773 = vmul.f32 %v653, %v653
        %v774 = vmul.f32 %v654, %v654
        %v775 = vmul.f32 %v655, %v655
        %v776 = vmul.f32 %v656, %v656
        %v777 = vsub.f32 %v729, %v753
        %v778 = vsub.f32 %v730, %v754
        %v779 = vsub.f32 %v731, %v755
        %v780 = vsub.f32 %v732, %v756
        %v781 = vsub.f32 %v733, %v757
        %v782 = vsub.f32 %v734, %v758
        %v783 = vsub.f32 %v735, %v759
        %v784 = vsub.f32 %v736, %v760
        %v785 = vsub.f32 %v737, %v761
        %v786 = vsub.f32 %v738, %v762
        %v787 = vsub.f32 %v739, %v763
        %v788 = vsub.f32 %v740, %v764
        %v789 = vsub.f32 %v741, %v765
        %v790 = vsub.f32 %v742, %v766
        %v791 = vsub.f32 %v743, %v767
        %v792 = vsub.f32 %v744, %v768
        %v793 = vsub.f32 %v745, %v769
        %v794 = vsub.f32 %v746, %v770
        %v795 = vsub.f32 %v747, %v771
        %v796 = vsub.f32 %v748, %v772
        %v797 = vsub.f32 %v749, %v773
        %v798 = vsub.f32 %v750, %v774
        %v799 = vsub.f32 %v751, %v775
        %v800 = vsub.f32 %v752, %v776
        %v801 = vmax.f32 %v777, 0.0
        %v802 = vmax.f32 %v778, 0.0
        %v803 = vmax.f32 %v779, 0.0
        %v804 = vmax.f32 %v780, 0.0
        %v805 = vmax.f32 %v781, 0.0
        %v806 = vmax.f32 %v782, 0.0
        %v807 = vmax.f32 %v783, 0.0
        %v808 = vmax.f32 %v784, 0.0
        %v809 = vmax.f32 %v785, 0.0
        %v810 = vmax.f32 %v786, 0.0
        %v811 = vmax.f32 %v787, 0.0
        %v812 = vmax.f32 %v788, 0.0
        %v813 = vmax.f32 %v789, 0.0
        %v814 = vmax.f32 %v790, 0.0
        %v815 = vmax.f32 %v791, 0.0
        %v816 = vmax.f32 %v792, 0.0
        %v817 = vmax.f32 %v793, 0.0
        %v818 = vmax.f32 %v794, 0.0
        %v819 = vmax.f32 %v795, 0.0
        %v820 = vmax.f32 %v796, 0.0
        %v821 = vmax.f32 %v797, 0.0
        %v822 = vmax.f32 %v798, 0.0
        %v823 = vmax.f32 %v799, 0.0
        %v824 = vmax.f32 %v800, 0.0
        %v825 = vsub.f32 %v467, %v633
        %v826 = vsub.f32 %v472, %v634
        %v827 = vsub.f32 %v477, %v635
        %v828 = vsub.f32 %v482, %v636
        %v829 = vsub.f32 %v487, %v637
        %v830 = vsub.f32 %v492, %v638
        %v831 = vsub.f32 %v497, %v639
        %v832 = vsub.f32 %v502, %v640
        %v833 = vsub.f32 %v507, %v641
        %v834 = vsub.f32 %v512, %v642
        %v835 = vsub.f32 %v517, %v643
        %v836 = vsub.f32 %v522, %v644
        %v837 = vsub.f32 %v527, %v645
        %v838 = vsub.f32 %v532, %v646
        %v839 = vsub.f32 %v537, %v647
        %v840 = vsub.f32 %v542, %v648
        %v841 = vsub.f32 %v547, %v649
        %v842 = vsub.f32 %v552, %v650
        %v843 = vsub.f32 %v557, %v651
        %v844 = vsub.f32 %v562, %v652
        %v845 = vsub.f32 %v567, %v653
        %v846 = vsub.f32 %v572, %v654
        %v847 = vsub.f32 %v577, %v655
        %v848 = vsub.f32 %v582, %v656
        %v849 = vadd.f32 %v801, 1e-05
        %v850 = vadd.f32 %v802, 1e-05
        %v851 = vadd.f32 %v803, 1e-05
        %v852 = vadd.f32 %v804, 1e-05
        %v853 = vadd.f32 %v805, 1e-05
        %v854 = vadd.f32 %v806, 1e-05
        %v855 = vadd.f32 %v807, 1e-05
        %v856 = vadd.f32 %v808, 1e-05
        %v857 = vadd.f32 %v809, 1e-05
        %v858 = vadd.f32 %v810, 1e-05
        %v859 = vadd.f32 %v811, 1e-05
        %v860 = vadd.f32 %v812, 1e-05
        %v861 = vadd.f32 %v813, 1e-05
        %v862 = vadd.f32 %v814, 1e-05
        %v863 = vadd.f32 %v815, 1e-05
        %v864 = vadd.f32 %v816, 1e-05
        %v865 = vadd.f32 %v817, 1e-05
        %v866 = vadd.f32 %v818, 1e-05
        %v867 = vadd.f32 %v819, 1e-05
        %v868 = vadd.f32 %v820, 1e-05
        %v869 = vadd.f32 %v821, 1e-05
        %v870 = vadd.f32 %v822, 1e-05
        %v871 = vadd.f32 %v823, 1e-05
        %v872 = vadd.f32 %v824, 1e-05
        %v873 = vrsqrt.pop %v849
        %v874 = vrsqrt.pop %v850
        %v875 = vrsqrt.pop %v851
        %v876 = vrsqrt.pop %v852
        %v877 = vrsqrt.pop %v853
        %v878 = vrsqrt.pop %v854
        %v879 = vrsqrt.pop %v855
        %v880 = vrsqrt.pop %v856
        %v881 = vrsqrt.pop %v857
        %v882 = vrsqrt.pop %v858
        %v883 = vrsqrt.pop %v859
        %v884 = vrsqrt.pop %v860
        %v885 = vrsqrt.pop %v861
        %v886 = vrsqrt.pop %v862
        %v887 = vrsqrt.pop %v863
        %v888 = vrsqrt.pop %v864
        %v889 = vrsqrt.pop %v865
        %v890 = vrsqrt.pop %v866
        %v891 = vrsqrt.pop %v867
        %v892 = vrsqrt.pop %v868
        %v893 = vrsqrt.pop %v869
        %v894 = vrsqrt.pop %v870
        %v895 = vrsqrt.pop %v871
        %v896 = vrsqrt.pop %v872
        %v897 = vmul.f32 %v825, %v873
        %v898 = vmul.f32 %v826, %v874
        %v899 = vmul.f32 %v827, %v875
        %v900 = vmul.f32 %v828, %v876
        %v901 = vmul.f32 %v829, %v877
        %v902 = vmul.f32 %v830, %v878
        %v903 = vmul.f32 %v831, %v879
        %v904 = vmul.f32 %v832, %v880
        %v905 = vmul.f32 %v833, %v881
        %v906 = vmul.f32 %v834, %v882
        %v907 = vmul.f32 %v835, %v883
        %v908 = vmul.f32 %v836, %v884
        %v909 = vmul.f32 %v837, %v885
        %v910 = vmul.f32 %v838, %v886
        %v911 = vmul.f32 %v839, %v887
        %v912 = vmul.f32 %v840, %v888
        %v913 = vmul.f32 %v841, %v889
        %v914 = vmul.f32 %v842, %v890
        %v915 = vmul.f32 %v843, %v891
        %v916 = vmul.f32 %v844, %v892
        %v917 = vmul.f32 %v845, %v893
        %v918 = vmul.f32 %v846, %v894
        %v919 = vmul.f32 %v847, %v895
        %v920 = vmul.f32 %v848, %v896
        %v921 = vld [vmem:[#allocation7 + $0x1] sm:$0x1]
        %v922 = vlaneseq
        %v923 = vshrl.u32 %v922, 7
        %v924 = vsub.s32 0, %v923
        %v925 = vrot.slane %v921, %v924
        %v926 = vmul.f32 %v897, %v925
        %v927 = vmul.f32 %v898, %v925
        %v928 = vmul.f32 %v899, %v925
        %v929 = vmul.f32 %v900, %v925
        %v930 = vmul.f32 %v901, %v925
        %v931 = vmul.f32 %v902, %v925
        %v932 = vmul.f32 %v903, %v925
        %v933 = vmul.f32 %v904, %v925
        %v934 = vmul.f32 %v905, %v925
        %v935 = vmul.f32 %v906, %v925
        %v936 = vmul.f32 %v907, %v925
        %v937 = vmul.f32 %v908, %v925
        %v938 = vmul.f32 %v909, %v925
        %v939 = vmul.f32 %v910, %v925
        %v940 = vmul.f32 %v911, %v925
        %v941 = vmul.f32 %v912, %v925
        %v942 = vmul.f32 %v913, %v925
        %v943 = vmul.f32 %v914, %v925
        %v944 = vmul.f32 %v915, %v925
        %v945 = vmul.f32 %v916, %v925
        %v946 = vmul.f32 %v917, %v925
        %v947 = vmul.f32 %v918, %v925
        %v948 = vmul.f32 %v919, %v925
        %v949 = vmul.f32 %v920, %v925
        %v950 = vld [vmem:[#allocation7 + $0x2] sm:$0x1]
        %v951 = vlaneseq
        %v952 = vshrl.u32 %v951, 7
        %v953 = vsub.s32 0, %v952
        %v954 = vrot.slane %v950, %v953
        %v955 = vadd.f32 %v926, %v954
        %v956 = vadd.f32 %v927, %v954
        %v957 = vadd.f32 %v928, %v954
        %v958 = vadd.f32 %v929, %v954
        %v959 = vadd.f32 %v930, %v954
        %v960 = vadd.f32 %v931, %v954
        %v961 = vadd.f32 %v932, %v954
        %v962 = vadd.f32 %v933, %v954
        %v963 = vadd.f32 %v934, %v954
        %v964 = vadd.f32 %v935, %v954
        %v965 = vadd.f32 %v936, %v954
        %v966 = vadd.f32 %v937, %v954
        %v967 = vadd.f32 %v938, %v954
        %v968 = vadd.f32 %v939, %v954
        %v969 = vadd.f32 %v940, %v954
        %v970 = vadd.f32 %v941, %v954
        %v971 = vadd.f32 %v942, %v954
        %v972 = vadd.f32 %v943, %v954
        %v973 = vadd.f32 %v944, %v954
        %v974 = vadd.f32 %v945, %v954
        %v975 = vadd.f32 %v946, %v954
        %v976 = vadd.f32 %v947, %v954
        %v977 = vadd.f32 %v948, %v954
        %v978 = vadd.f32 %v949, %v954
        %vm979 = vcmp.ge.f32.partialorder %v955, 0.0
        %vm980 = vcmp.ge.f32.partialorder %v956, 0.0
        %vm981 = vcmp.ge.f32.partialorder %v957, 0.0
        %vm982 = vcmp.ge.f32.partialorder %v958, 0.0
        %vm983 = vcmp.ge.f32.partialorder %v959, 0.0
        %vm984 = vcmp.ge.f32.partialorder %v960, 0.0
        %vm985 = vcmp.ge.f32.partialorder %v961, 0.0
        %vm986 = vcmp.ge.f32.partialorder %v962, 0.0
        %vm987 = vcmp.ge.f32.partialorder %v963, 0.0
        %vm988 = vcmp.ge.f32.partialorder %v964, 0.0
        %vm989 = vcmp.ge.f32.partialorder %v965, 0.0
        %vm990 = vcmp.ge.f32.partialorder %v966, 0.0
        %vm991 = vcmp.ge.f32.partialorder %v967, 0.0
        %vm992 = vcmp.ge.f32.partialorder %v968, 0.0
        %vm993 = vcmp.ge.f32.partialorder %v969, 0.0
        %vm994 = vcmp.ge.f32.partialorder %v970, 0.0
        %vm995 = vcmp.ge.f32.partialorder %v971, 0.0
        %vm996 = vcmp.ge.f32.partialorder %v972, 0.0
        %vm997 = vcmp.ge.f32.partialorder %v973, 0.0
        %vm998 = vcmp.ge.f32.partialorder %v974, 0.0
        %vm999 = vcmp.ge.f32.partialorder %v975, 0.0
        %vm1000 = vcmp.ge.f32.partialorder %v976, 0.0
        %vm1001 = vcmp.ge.f32.partialorder %v977, 0.0
        %vm1002 = vcmp.ge.f32.partialorder %v978, 0.0
        %v1003 = vmul.f32 %v955, 0.01
        %v1004 = vmul.f32 %v956, 0.01
        %v1005 = vmul.f32 %v957, 0.01
        %v1006 = vmul.f32 %v958, 0.01
        %v1007 = vmul.f32 %v959, 0.01
        %v1008 = vmul.f32 %v960, 0.01
        %v1009 = vmul.f32 %v961, 0.01
        %v1010 = vmul.f32 %v962, 0.01
        %v1011 = vmul.f32 %v963, 0.01
        %v1012 = vmul.f32 %v964, 0.01
        %v1013 = vmul.f32 %v965, 0.01
        %v1014 = vmul.f32 %v966, 0.01
        %v1015 = vmul.f32 %v967, 0.01
        %v1016 = vmul.f32 %v968, 0.01
        %v1017 = vmul.f32 %v969, 0.01
        %v1018 = vmul.f32 %v970, 0.01
        %v1019 = vmul.f32 %v971, 0.01
        %v1020 = vmul.f32 %v972, 0.01
        %v1021 = vmul.f32 %v973, 0.01
        %v1022 = vmul.f32 %v974, 0.01
        %v1023 = vmul.f32 %v975, 0.01
        %v1024 = vmul.f32 %v976, 0.01
        %v1025 = vmul.f32 %v977, 0.01
        %v1026 = vmul.f32 %v978, 0.01
        %v1027 = vsel %vm979, %v955, %v1003
        %v1028 = vsel %vm980, %v956, %v1004
        %v1029 = vsel %vm981, %v957, %v1005
        %v1030 = vsel %vm982, %v958, %v1006
        %v1031 = vsel %vm983, %v959, %v1007
        %v1032 = vsel %vm984, %v960, %v1008
        %v1033 = vsel %vm985, %v961, %v1009
        %v1034 = vsel %vm986, %v962, %v1010
        %v1035 = vsel %vm987, %v963, %v1011
        %v1036 = vsel %vm988, %v964, %v1012
        %v1037 = vsel %vm989, %v965, %v1013
        %v1038 = vsel %vm990, %v966, %v1014
        %v1039 = vsel %vm991, %v967, %v1015
        %v1040 = vsel %vm992, %v968, %v1016
        %v1041 = vsel %vm993, %v969, %v1017
        %v1042 = vsel %vm994, %v970, %v1018
        %v1043 = vsel %vm995, %v971, %v1019
        %v1044 = vsel %vm996, %v972, %v1020
        %v1045 = vsel %vm997, %v973, %v1021
        %v1046 = vsel %vm998, %v974, %v1022
        %v1047 = vsel %vm999, %v975, %v1023
        %v1048 = vsel %vm1000, %v976, %v1024
        %v1049 = vsel %vm1001, %v977, %v1025
        %v1050 = vsel %vm1002, %v978, %v1026
        %v1051 = vld [vmem:[#allocation8] sm:$0xff]
        %v1052 = vld [vmem:[#allocation8 + $0x8] sm:$0xff]
        %v1053 = vld [vmem:[#allocation8 + $0x10] sm:$0xff]
        %v1054 = vld [vmem:[#allocation8 + $0x18] sm:$0xff]
        %v1055 = vld [vmem:[#allocation8 + $0x20] sm:$0xff]
        %v1056 = vld [vmem:[#allocation8 + $0x28] sm:$0xff]
        %v1057 = vld [vmem:[#allocation8 + $0x30] sm:$0xff]
        %v1058 = vld [vmem:[#allocation8 + $0x38] sm:$0xff]
        %v1059 = vld [vmem:[#allocation8 + $0x40] sm:$0xff]
        %v1060 = vld [vmem:[#allocation8 + $0x48] sm:$0xff]
        %v1061 = vld [vmem:[#allocation8 + $0x50] sm:$0xff]
        %v1062 = vld [vmem:[#allocation8 + $0x58] sm:$0xff]
        %v1063 = vld [vmem:[#allocation8 + $0x60] sm:$0xff]
        %v1064 = vld [vmem:[#allocation8 + $0x68] sm:$0xff]
        %v1065 = vld [vmem:[#allocation8 + $0x70] sm:$0xff]
        %v1066 = vld [vmem:[#allocation8 + $0x78] sm:$0xff]
        %v1067 = vld [vmem:[%s4] sm:$0x1]
        %v1068 = vlaneseq
        %v1069 = vshrl.u32 %v1068, 7
        %v1070 = vsub.s32 0, %v1069
        %v1071 = vrot.slane %v1067, %v1070
        %1072 = vmatprep.subr.mxu0 0.0
        %1073 = vmatpush1.msra.mxu0 %v1051
        %1074 = vmatprep.subr.mxu0 0.0
        %1075 = vmatpush1.msra.mxu0 %v1052
        %1076 = vmatprep.subr.mxu0 0.0
        %1077 = vmatpush1.msra.mxu0 %v1053
        %1078 = vmatprep.subr.mxu0 0.0
        %1079 = vmatpush1.msra.mxu0 %v1054
        %1080 = vmatprep.subr.mxu0 0.0
        %1081 = vmatpush1.msra.mxu0 %v1055
        %1082 = vmatprep.subr.mxu0 0.0
        %1083 = vmatpush1.msra.mxu0 %v1056
        %1084 = vmatprep.subr.mxu0 0.0
        %1085 = vmatpush1.msra.mxu0 %v1057
        %1086 = vmatprep.subr.mxu0 0.0
        %1087 = vmatpush1.msra.mxu0 %v1058
        %1088 = vmatprep.subr.mxu0 0.0
        %1089 = vmatpush1.msra.mxu0 %v1059
        %1090 = vmatprep.subr.mxu0 0.0
        %1091 = vmatpush1.msra.mxu0 %v1060
        %1092 = vmatprep.subr.mxu0 0.0
        %1093 = vmatpush1.msra.mxu0 %v1061
        %1094 = vmatprep.subr.mxu0 0.0
        %1095 = vmatpush1.msra.mxu0 %v1062
        %1096 = vmatprep.subr.mxu0 0.0
        %1097 = vmatpush1.msra.mxu0 %v1063
        %1098 = vmatprep.subr.mxu0 0.0
        %1099 = vmatpush1.msra.mxu0 %v1064
        %1100 = vmatprep.subr.mxu0 0.0
        %1101 = vmatpush1.msra.mxu0 %v1065
        %1102 = vmatprep.subr.mxu0 0.0
        %1103 = vmatpush1.msra.mxu0 %v1066
        %1104 = vmatprep.subr.mxu0 0.0
        %1105 = vmatpush1.msra.mxu0 0.0
        %1106 = vmatprep.subr.mxu0 0.0
        %1107 = vmatpush1.msra.mxu0 0.0
        %1108 = vmatprep.subr.mxu0 0.0
        %1109 = vmatpush1.msra.mxu0 0.0
        %1110 = vmatprep.subr.mxu0 0.0
        %1111 = vmatpush1.msra.mxu0 0.0
        %1112 = vmatprep.subr.mxu0 0.0
        %1113 = vmatpush1.msra.mxu0 0.0
        %1114 = vmatprep.subr.mxu0 0.0
        %1115 = vmatpush1.msra.mxu0 0.0
        %1116 = vmatprep.subr.mxu0 0.0
        %1117 = vmatpush1.msra.mxu0 0.0
        %1118 = vmatprep.subr.mxu0 0.0
        %1119 = vmatpush1.msra.mxu0 0.0
        %1120 = vmatprep.subr.mxu0 0.0
        %1121 = vmatpush1.msra.mxu0 0.0
        %1122 = vmatprep.subr.mxu0 0.0
        %1123 = vmatpush1.msra.mxu0 0.0
        %1124 = vmatprep.subr.mxu0 0.0
        %1125 = vmatpush1.msra.mxu0 0.0
        %1126 = vmatprep.subr.mxu0 0.0
        %1127 = vmatpush1.msra.mxu0 0.0
        %1128 = vmatprep.subr.mxu0 0.0
        %1129 = vmatpush1.msra.mxu0 0.0
        %1130 = vmatprep.subr.mxu0 0.0
        %1131 = vmatpush1.msra.mxu0 0.0
        %1132 = vmatprep.subr.mxu0 0.0
        %1133 = vmatpush1.msra.mxu0 0.0
        %1134 = vmatprep.subr.mxu0 0.0
        %1135 = vmatpush1.msra.mxu0 0.0
        %1136 = vmatprep.mubr.f32.mxu0 0.0
        %1137 = vmatmul.mubr.f32.gmra.mrb[0].mxu0 %v1027
        %v1138 = vpop.f32.mrb[0].mxu0
        %v1139 = vadd.f32 %v1071, %v1138
        %v1140 = vpop.f32.mrb[0].mxu0
        %1141 = vmatprep.mubr.f32.mxu0 0.0
        %1142 = vmatmul.mubr.f32.gmra.mrb[0].mxu0 %v1028
        %v1143 = vpop.f32.mrb[0].mxu0
        %v1144 = vadd.f32 %v1071, %v1143
        %v1145 = vpop.f32.mrb[0].mxu0
        %1146 = vmatprep.mubr.f32.mxu0 0.0
        %1147 = vmatmul.mubr.f32.gmra.mrb[0].mxu0 %v1029
        %v1148 = vpop.f32.mrb[0].mxu0
        %v1149 = vadd.f32 %v1071, %v1148
        %v1150 = vpop.f32.mrb[0].mxu0
        %1151 = vmatprep.mubr.f32.mxu0 0.0
        %1152 = vmatmul.mubr.f32.gmra.mrb[0].mxu0 %v1030
        %v1153 = vpop.f32.mrb[0].mxu0
        %v1154 = vadd.f32 %v1071, %v1153
        %v1155 = vpop.f32.mrb[0].mxu0
        %1156 = vmatprep.mubr.f32.mxu0 0.0
        %1157 = vmatmul.mubr.f32.gmra.mrb[0].mxu0 %v1031
        %v1158 = vpop.f32.mrb[0].mxu0
        %v1159 = vadd.f32 %v1071, %v1158
        %v1160 = vpop.f32.mrb[0].mxu0
        %1161 = vmatprep.mubr.f32.mxu0 0.0
        %1162 = vmatmul.mubr.f32.gmra.mrb[0].mxu0 %v1032
        %v1163 = vpop.f32.mrb[0].mxu0
        %v1164 = vadd.f32 %v1071, %v1163
        %v1165 = vpop.f32.mrb[0].mxu0
        %1166 = vmatprep.mubr.f32.mxu0 0.0
        %1167 = vmatmul.mubr.f32.gmra.mrb[0].mxu0 %v1033
        %v1168 = vpop.f32.mrb[0].mxu0
        %v1169 = vadd.f32 %v1071, %v1168
        %v1170 = vpop.f32.mrb[0].mxu0
        %1171 = vmatprep.mubr.f32.mxu0 0.0
        %1172 = vmatmul.mubr.f32.gmra.mrb[0].mxu0 %v1034
        %v1173 = vpop.f32.mrb[0].mxu0
        %v1174 = vadd.f32 %v1071, %v1173
        %v1175 = vpop.f32.mrb[0].mxu0
        %1176 = vmatprep.mubr.f32.mxu0 0.0
        %1177 = vmatmul.mubr.f32.gmra.mrb[0].mxu0 %v1035
        %v1178 = vpop.f32.mrb[0].mxu0
        %v1179 = vadd.f32 %v1071, %v1178
        %v1180 = vpop.f32.mrb[0].mxu0
        %1181 = vmatprep.mubr.f32.mxu0 0.0
        %1182 = vmatmul.mubr.f32.gmra.mrb[0].mxu0 %v1036
        %v1183 = vpop.f32.mrb[0].mxu0
        %v1184 = vadd.f32 %v1071, %v1183
        %v1185 = vpop.f32.mrb[0].mxu0
        %1186 = vmatprep.mubr.f32.mxu0 0.0
        %1187 = vmatmul.mubr.f32.gmra.mrb[0].mxu0 %v1037
        %v1188 = vpop.f32.mrb[0].mxu0
        %v1189 = vadd.f32 %v1071, %v1188
        %v1190 = vpop.f32.mrb[0].mxu0
        %1191 = vmatprep.mubr.f32.mxu0 0.0
        %1192 = vmatmul.mubr.f32.gmra.mrb[0].mxu0 %v1038
        %v1193 = vpop.f32.mrb[0].mxu0
        %v1194 = vadd.f32 %v1071, %v1193
        %v1195 = vpop.f32.mrb[0].mxu0
        %1196 = vmatprep.mubr.f32.mxu0 0.0
        %1197 = vmatmul.mubr.f32.gmra.mrb[0].mxu0 %v1039
        %v1198 = vpop.f32.mrb[0].mxu0
        %v1199 = vadd.f32 %v1071, %v1198
        %v1200 = vpop.f32.mrb[0].mxu0
        %1201 = vmatprep.mubr.f32.mxu0 0.0
        %1202 = vmatmul.mubr.f32.gmra.mrb[0].mxu0 %v1040
        %v1203 = vpop.f32.mrb[0].mxu0
        %v1204 = vadd.f32 %v1071, %v1203
        %v1205 = vpop.f32.mrb[0].mxu0
        %1206 = vmatprep.mubr.f32.mxu0 0.0
        %1207 = vmatmul.mubr.f32.gmra.mrb[0].mxu0 %v1041
        %v1208 = vpop.f32.mrb[0].mxu0
        %v1209 = vadd.f32 %v1071, %v1208
        %v1210 = vpop.f32.mrb[0].mxu0
        %1211 = vmatprep.mubr.f32.mxu0 0.0
        %1212 = vmatmul.mubr.f32.gmra.mrb[0].mxu0 %v1042
        %v1213 = vpop.f32.mrb[0].mxu0
        %v1214 = vadd.f32 %v1071, %v1213
        %v1215 = vpop.f32.mrb[0].mxu0
        %1216 = vmatprep.mubr.f32.mxu0 0.0
        %1217 = vmatmul.mubr.f32.gmra.mrb[0].mxu0 %v1043
        %v1218 = vpop.f32.mrb[0].mxu0
        %v1219 = vadd.f32 %v1071, %v1218
        %v1220 = vpop.f32.mrb[0].mxu0
        %1221 = vmatprep.mubr.f32.mxu0 0.0
        %1222 = vmatmul.mubr.f32.gmra.mrb[0].mxu0 %v1044
        %v1223 = vpop.f32.mrb[0].mxu0
        %v1224 = vadd.f32 %v1071, %v1223
        %v1225 = vpop.f32.mrb[0].mxu0
        %1226 = vmatprep.mubr.f32.mxu0 0.0
        %1227 = vmatmul.mubr.f32.gmra.mrb[0].mxu0 %v1045
        %v1228 = vpop.f32.mrb[0].mxu0
        %v1229 = vadd.f32 %v1071, %v1228
        %v1230 = vpop.f32.mrb[0].mxu0
        %1231 = vmatprep.mubr.f32.mxu0 0.0
        %1232 = vmatmul.mubr.f32.gmra.mrb[0].mxu0 %v1046
        %v1233 = vpop.f32.mrb[0].mxu0
        %v1234 = vadd.f32 %v1071, %v1233
        %v1235 = vpop.f32.mrb[0].mxu0
        %1236 = vmatprep.mubr.f32.mxu0 0.0
        %1237 = vmatmul.mubr.f32.gmra.mrb[0].mxu0 %v1047
        %v1238 = vpop.f32.mrb[0].mxu0
        %v1239 = vadd.f32 %v1071, %v1238
        %v1240 = vpop.f32.mrb[0].mxu0
        %1241 = vmatprep.mubr.f32.mxu0 0.0
        %1242 = vmatmul.mubr.f32.gmra.mrb[0].mxu0 %v1048
        %v1243 = vpop.f32.mrb[0].mxu0
        %v1244 = vadd.f32 %v1071, %v1243
        %v1245 = vpop.f32.mrb[0].mxu0
        %1246 = vmatprep.mubr.f32.mxu0 0.0
        %1247 = vmatmul.mubr.f32.gmra.mrb[0].mxu0 %v1049
        %v1248 = vpop.f32.mrb[0].mxu0
        %v1249 = vadd.f32 %v1071, %v1248
        %v1250 = vpop.f32.mrb[0].mxu0
        %1251 = vmatprep.mubr.f32.mxu0 0.0
        %1252 = vmatmul.mubr.f32.gmra.mrb[0].mxu0 %v1050
        %v1253 = vpop.f32.mrb[0].mxu0
        %v1254 = vadd.f32 %v1071, %v1253
        %v1255 = vpop.f32.mrb[0].mxu0
        %1256 = vdwg.mxu0
        %1257 = vadd.xlane.f32.xlu0 %v1139
        %v1258 = vpop.xlane.xlu0 %1257
        %1259 = vadd.xlane.f32.xlu0 %v1144
        %v1260 = vpop.xlane.xlu0 %1259
        %1261 = vadd.xlane.f32.xlu0 %v1149
        %v1262 = vpop.xlane.xlu0 %1261
        %1263 = vadd.xlane.f32.xlu0 %v1154
        %v1264 = vpop.xlane.xlu0 %1263
        %1265 = vadd.xlane.f32.xlu0 %v1159
        %v1266 = vpop.xlane.xlu0 %1265
        %1267 = vadd.xlane.f32.xlu0 %v1164
        %v1268 = vpop.xlane.xlu0 %1267
        %1269 = vadd.xlane.f32.xlu0 %v1169
        %v1270 = vpop.xlane.xlu0 %1269
        %1271 = vadd.xlane.f32.xlu0 %v1174
        %v1272 = vpop.xlane.xlu0 %1271
        %1273 = vadd.xlane.f32.xlu0 %v1179
        %v1274 = vpop.xlane.xlu0 %1273
        %1275 = vadd.xlane.f32.xlu0 %v1184
        %v1276 = vpop.xlane.xlu0 %1275
        %1277 = vadd.xlane.f32.xlu0 %v1189
        %v1278 = vpop.xlane.xlu0 %1277
        %1279 = vadd.xlane.f32.xlu0 %v1194
        %v1280 = vpop.xlane.xlu0 %1279
        %1281 = vadd.xlane.f32.xlu0 %v1199
        %v1282 = vpop.xlane.xlu0 %1281
        %1283 = vadd.xlane.f32.xlu0 %v1204
        %v1284 = vpop.xlane.xlu0 %1283
        %1285 = vadd.xlane.f32.xlu0 %v1209
        %v1286 = vpop.xlane.xlu0 %1285
        %1287 = vadd.xlane.f32.xlu0 %v1214
        %v1288 = vpop.xlane.xlu0 %1287
        %1289 = vadd.xlane.f32.xlu0 %v1219
        %v1290 = vpop.xlane.xlu0 %1289
        %1291 = vadd.xlane.f32.xlu0 %v1224
        %v1292 = vpop.xlane.xlu0 %1291
        %1293 = vadd.xlane.f32.xlu0 %v1229
        %v1294 = vpop.xlane.xlu0 %1293
        %1295 = vadd.xlane.f32.xlu0 %v1234
        %v1296 = vpop.xlane.xlu0 %1295
        %1297 = vadd.xlane.f32.xlu0 %v1239
        %v1298 = vpop.xlane.xlu0 %1297
        %1299 = vadd.xlane.f32.xlu0 %v1244
        %v1300 = vpop.xlane.xlu0 %1299
        %1301 = vadd.xlane.f32.xlu0 %v1249
        %v1302 = vpop.xlane.xlu0 %1301
        %1303 = vadd.xlane.f32.xlu0 %v1254
        %v1304 = vpop.xlane.xlu0 %1303
        %v1305 = vmul.f32 %v1258, 0.0078125
        %v1306 = vmul.f32 %v1260, 0.0078125
        %v1307 = vmul.f32 %v1262, 0.0078125
        %v1308 = vmul.f32 %v1264, 0.0078125
        %v1309 = vmul.f32 %v1266, 0.0078125
        %v1310 = vmul.f32 %v1268, 0.0078125
        %v1311 = vmul.f32 %v1270, 0.0078125
        %v1312 = vmul.f32 %v1272, 0.0078125
        %v1313 = vmul.f32 %v1274, 0.0078125
        %v1314 = vmul.f32 %v1276, 0.0078125
        %v1315 = vmul.f32 %v1278, 0.0078125
        %v1316 = vmul.f32 %v1280, 0.0078125
        %v1317 = vmul.f32 %v1282, 0.0078125
        %v1318 = vmul.f32 %v1284, 0.0078125
        %v1319 = vmul.f32 %v1286, 0.0078125
        %v1320 = vmul.f32 %v1288, 0.0078125
        %v1321 = vmul.f32 %v1290, 0.0078125
        %v1322 = vmul.f32 %v1292, 0.0078125
        %v1323 = vmul.f32 %v1294, 0.0078125
        %v1324 = vmul.f32 %v1296, 0.0078125
        %v1325 = vmul.f32 %v1298, 0.0078125
        %v1326 = vmul.f32 %v1300, 0.0078125
        %v1327 = vmul.f32 %v1302, 0.0078125
        %v1328 = vmul.f32 %v1304, 0.0078125
        %v1329 = vmul.f32 %v1139, %v1139
        %v1330 = vmul.f32 %v1144, %v1144
        %v1331 = vmul.f32 %v1149, %v1149
        %v1332 = vmul.f32 %v1154, %v1154
        %v1333 = vmul.f32 %v1159, %v1159
        %v1334 = vmul.f32 %v1164, %v1164
        %v1335 = vmul.f32 %v1169, %v1169
        %v1336 = vmul.f32 %v1174, %v1174
        %v1337 = vmul.f32 %v1179, %v1179
        %v1338 = vmul.f32 %v1184, %v1184
        %v1339 = vmul.f32 %v1189, %v1189
        %v1340 = vmul.f32 %v1194, %v1194
        %v1341 = vmul.f32 %v1199, %v1199
        %v1342 = vmul.f32 %v1204, %v1204
        %v1343 = vmul.f32 %v1209, %v1209
        %v1344 = vmul.f32 %v1214, %v1214
        %v1345 = vmul.f32 %v1219, %v1219
        %v1346 = vmul.f32 %v1224, %v1224
        %v1347 = vmul.f32 %v1229, %v1229
        %v1348 = vmul.f32 %v1234, %v1234
        %v1349 = vmul.f32 %v1239, %v1239
        %v1350 = vmul.f32 %v1244, %v1244
        %v1351 = vmul.f32 %v1249, %v1249
        %v1352 = vmul.f32 %v1254, %v1254
        %1353 = vadd.xlane.f32.xlu0 %v1329
        %v1354 = vpop.xlane.xlu0 %1353
        %1355 = vadd.xlane.f32.xlu0 %v1330
        %v1356 = vpop.xlane.xlu0 %1355
        %1357 = vadd.xlane.f32.xlu0 %v1331
        %v1358 = vpop.xlane.xlu0 %1357
        %1359 = vadd.xlane.f32.xlu0 %v1332
        %v1360 = vpop.xlane.xlu0 %1359
        %1361 = vadd.xlane.f32.xlu0 %v1333
        %v1362 = vpop.xlane.xlu0 %1361
        %1363 = vadd.xlane.f32.xlu0 %v1334
        %v1364 = vpop.xlane.xlu0 %1363
        %1365 = vadd.xlane.f32.xlu0 %v1335
        %v1366 = vpop.xlane.xlu0 %1365
        %1367 = vadd.xlane.f32.xlu0 %v1336
        %v1368 = vpop.xlane.xlu0 %1367
        %1369 = vadd.xlane.f32.xlu0 %v1337
        %v1370 = vpop.xlane.xlu0 %1369
        %1371 = vadd.xlane.f32.xlu0 %v1338
        %v1372 = vpop.xlane.xlu0 %1371
        %1373 = vadd.xlane.f32.xlu0 %v1339
        %v1374 = vpop.xlane.xlu0 %1373
        %1375 = vadd.xlane.f32.xlu0 %v1340
        %v1376 = vpop.xlane.xlu0 %1375
        %1377 = vadd.xlane.f32.xlu0 %v1341
        %v1378 = vpop.xlane.xlu0 %1377
        %1379 = vadd.xlane.f32.xlu0 %v1342
        %v1380 = vpop.xlane.xlu0 %1379
        %1381 = vadd.xlane.f32.xlu0 %v1343
        %v1382 = vpop.xlane.xlu0 %1381
        %1383 = vadd.xlane.f32.xlu0 %v1344
        %v1384 = vpop.xlane.xlu0 %1383
        %1385 = vadd.xlane.f32.xlu0 %v1345
        %v1386 = vpop.xlane.xlu0 %1385
        %1387 = vadd.xlane.f32.xlu0 %v1346
        %v1388 = vpop.xlane.xlu0 %1387
        %1389 = vadd.xlane.f32.xlu0 %v1347
        %v1390 = vpop.xlane.xlu0 %1389
        %1391 = vadd.xlane.f32.xlu0 %v1348
        %v1392 = vpop.xlane.xlu0 %1391
        %1393 = vadd.xlane.f32.xlu0 %v1349
        %v1394 = vpop.xlane.xlu0 %1393
        %1395 = vadd.xlane.f32.xlu0 %v1350
        %v1396 = vpop.xlane.xlu0 %1395
        %1397 = vadd.xlane.f32.xlu0 %v1351
        %v1398 = vpop.xlane.xlu0 %1397
        %1399 = vadd.xlane.f32.xlu0 %v1352
        %v1400 = vpop.xlane.xlu0 %1399
        %v1401 = vmul.f32 %v1354, 0.0078125
        %v1402 = vmul.f32 %v1356, 0.0078125
        %v1403 = vmul.f32 %v1358, 0.0078125
        %v1404 = vmul.f32 %v1360, 0.0078125
        %v1405 = vmul.f32 %v1362, 0.0078125
        %v1406 = vmul.f32 %v1364, 0.0078125
        %v1407 = vmul.f32 %v1366, 0.0078125
        %v1408 = vmul.f32 %v1368, 0.0078125
        %v1409 = vmul.f32 %v1370, 0.0078125
        %v1410 = vmul.f32 %v1372, 0.0078125
        %v1411 = vmul.f32 %v1374, 0.0078125
        %v1412 = vmul.f32 %v1376, 0.0078125
        %v1413 = vmul.f32 %v1378, 0.0078125
        %v1414 = vmul.f32 %v1380, 0.0078125
        %v1415 = vmul.f32 %v1382, 0.0078125
        %v1416 = vmul.f32 %v1384, 0.0078125
        %v1417 = vmul.f32 %v1386, 0.0078125
        %v1418 = vmul.f32 %v1388, 0.0078125
        %v1419 = vmul.f32 %v1390, 0.0078125
        %v1420 = vmul.f32 %v1392, 0.0078125
        %v1421 = vmul.f32 %v1394, 0.0078125
        %v1422 = vmul.f32 %v1396, 0.0078125
        %v1423 = vmul.f32 %v1398, 0.0078125
        %v1424 = vmul.f32 %v1400, 0.0078125
        %v1425 = vmul.f32 %v1305, %v1305
        %v1426 = vmul.f32 %v1306, %v1306
        %v1427 = vmul.f32 %v1307, %v1307
        %v1428 = vmul.f32 %v1308, %v1308
        %v1429 = vmul.f32 %v1309, %v1309
        %v1430 = vmul.f32 %v1310, %v1310
        %v1431 = vmul.f32 %v1311, %v1311
        %v1432 = vmul.f32 %v1312, %v1312
        %v1433 = vmul.f32 %v1313, %v1313
        %v1434 = vmul.f32 %v1314, %v1314
        %v1435 = vmul.f32 %v1315, %v1315
        %v1436 = vmul.f32 %v1316, %v1316
        %v1437 = vmul.f32 %v1317, %v1317
        %v1438 = vmul.f32 %v1318, %v1318
        %v1439 = vmul.f32 %v1319, %v1319
        %v1440 = vmul.f32 %v1320, %v1320
        %v1441 = vmul.f32 %v1321, %v1321
        %v1442 = vmul.f32 %v1322, %v1322
        %v1443 = vmul.f32 %v1323, %v1323
        %v1444 = vmul.f32 %v1324, %v1324
        %v1445 = vmul.f32 %v1325, %v1325
        %v1446 = vmul.f32 %v1326, %v1326
        %v1447 = vmul.f32 %v1327, %v1327
        %v1448 = vmul.f32 %v1328, %v1328
        %v1449 = vsub.f32 %v1401, %v1425
        %v1450 = vsub.f32 %v1402, %v1426
        %v1451 = vsub.f32 %v1403, %v1427
        %v1452 = vsub.f32 %v1404, %v1428
        %v1453 = vsub.f32 %v1405, %v1429
        %v1454 = vsub.f32 %v1406, %v1430
        %v1455 = vsub.f32 %v1407, %v1431
        %v1456 = vsub.f32 %v1408, %v1432
        %v1457 = vsub.f32 %v1409, %v1433
        %v1458 = vsub.f32 %v1410, %v1434
        %v1459 = vsub.f32 %v1411, %v1435
        %v1460 = vsub.f32 %v1412, %v1436
        %v1461 = vsub.f32 %v1413, %v1437
        %v1462 = vsub.f32 %v1414, %v1438
        %v1463 = vsub.f32 %v1415, %v1439
        %v1464 = vsub.f32 %v1416, %v1440
        %v1465 = vsub.f32 %v1417, %v1441
        %v1466 = vsub.f32 %v1418, %v1442
        %v1467 = vsub.f32 %v1419, %v1443
        %v1468 = vsub.f32 %v1420, %v1444
        %v1469 = vsub.f32 %v1421, %v1445
        %v1470 = vsub.f32 %v1422, %v1446
        %v1471 = vsub.f32 %v1423, %v1447
        %v1472 = vsub.f32 %v1424, %v1448
        %v1473 = vmax.f32 %v1449, 0.0
        %v1474 = vmax.f32 %v1450, 0.0
        %v1475 = vmax.f32 %v1451, 0.0
        %v1476 = vmax.f32 %v1452, 0.0
        %v1477 = vmax.f32 %v1453, 0.0
        %v1478 = vmax.f32 %v1454, 0.0
        %v1479 = vmax.f32 %v1455, 0.0
        %v1480 = vmax.f32 %v1456, 0.0
        %v1481 = vmax.f32 %v1457, 0.0
        %v1482 = vmax.f32 %v1458, 0.0
        %v1483 = vmax.f32 %v1459, 0.0
        %v1484 = vmax.f32 %v1460, 0.0
        %v1485 = vmax.f32 %v1461, 0.0
        %v1486 = vmax.f32 %v1462, 0.0
        %v1487 = vmax.f32 %v1463, 0.0
        %v1488 = vmax.f32 %v1464, 0.0
        %v1489 = vmax.f32 %v1465, 0.0
        %v1490 = vmax.f32 %v1466, 0.0
        %v1491 = vmax.f32 %v1467, 0.0
        %v1492 = vmax.f32 %v1468, 0.0
        %v1493 = vmax.f32 %v1469, 0.0
        %v1494 = vmax.f32 %v1470, 0.0
        %v1495 = vmax.f32 %v1471, 0.0
        %v1496 = vmax.f32 %v1472, 0.0
        %v1497 = vsub.f32 %v1139, %v1305
        %v1498 = vsub.f32 %v1144, %v1306
        %v1499 = vsub.f32 %v1149, %v1307
        %v1500 = vsub.f32 %v1154, %v1308
        %v1501 = vsub.f32 %v1159, %v1309
        %v1502 = vsub.f32 %v1164, %v1310
        %v1503 = vsub.f32 %v1169, %v1311
        %v1504 = vsub.f32 %v1174, %v1312
        %v1505 = vsub.f32 %v1179, %v1313
        %v1506 = vsub.f32 %v1184, %v1314
        %v1507 = vsub.f32 %v1189, %v1315
        %v1508 = vsub.f32 %v1194, %v1316
        %v1509 = vsub.f32 %v1199, %v1317
        %v1510 = vsub.f32 %v1204, %v1318
        %v1511 = vsub.f32 %v1209, %v1319
        %v1512 = vsub.f32 %v1214, %v1320
        %v1513 = vsub.f32 %v1219, %v1321
        %v1514 = vsub.f32 %v1224, %v1322
        %v1515 = vsub.f32 %v1229, %v1323
        %v1516 = vsub.f32 %v1234, %v1324
        %v1517 = vsub.f32 %v1239, %v1325
        %v1518 = vsub.f32 %v1244, %v1326
        %v1519 = vsub.f32 %v1249, %v1327
        %v1520 = vsub.f32 %v1254, %v1328
        %v1521 = vadd.f32 %v1473, 1e-05
        %v1522 = vadd.f32 %v1474, 1e-05
        %v1523 = vadd.f32 %v1475, 1e-05
        %v1524 = vadd.f32 %v1476, 1e-05
        %v1525 = vadd.f32 %v1477, 1e-05
        %v1526 = vadd.f32 %v1478, 1e-05
        %v1527 = vadd.f32 %v1479, 1e-05
        %v1528 = vadd.f32 %v1480, 1e-05
        %v1529 = vadd.f32 %v1481, 1e-05
        %v1530 = vadd.f32 %v1482, 1e-05
        %v1531 = vadd.f32 %v1483, 1e-05
        %v1532 = vadd.f32 %v1484, 1e-05
        %v1533 = vadd.f32 %v1485, 1e-05
        %v1534 = vadd.f32 %v1486, 1e-05
        %v1535 = vadd.f32 %v1487, 1e-05
        %v1536 = vadd.f32 %v1488, 1e-05
        %v1537 = vadd.f32 %v1489, 1e-05
        %v1538 = vadd.f32 %v1490, 1e-05
        %v1539 = vadd.f32 %v1491, 1e-05
        %v1540 = vadd.f32 %v1492, 1e-05
        %v1541 = vadd.f32 %v1493, 1e-05
        %v1542 = vadd.f32 %v1494, 1e-05
        %v1543 = vadd.f32 %v1495, 1e-05
        %v1544 = vadd.f32 %v1496, 1e-05
        %v1545 = vrsqrt.pop %v1521
        %v1546 = vrsqrt.pop %v1522
        %v1547 = vrsqrt.pop %v1523
        %v1548 = vrsqrt.pop %v1524
        %v1549 = vrsqrt.pop %v1525
        %v1550 = vrsqrt.pop %v1526
        %v1551 = vrsqrt.pop %v1527
        %v1552 = vrsqrt.pop %v1528
        %v1553 = vrsqrt.pop %v1529
        %v1554 = vrsqrt.pop %v1530
        %v1555 = vrsqrt.pop %v1531
        %v1556 = vrsqrt.pop %v1532
        %v1557 = vrsqrt.pop %v1533
        %v1558 = vrsqrt.pop %v1534
        %v1559 = vrsqrt.pop %v1535
        %v1560 = vrsqrt.pop %v1536
        %v1561 = vrsqrt.pop %v1537
        %v1562 = vrsqrt.pop %v1538
        %v1563 = vrsqrt.pop %v1539
        %v1564 = vrsqrt.pop %v1540
        %v1565 = vrsqrt.pop %v1541
        %v1566 = vrsqrt.pop %v1542
        %v1567 = vrsqrt.pop %v1543
        %v1568 = vrsqrt.pop %v1544
        %v1569 = vmul.f32 %v1497, %v1545
        %v1570 = vmul.f32 %v1498, %v1546
        %v1571 = vmul.f32 %v1499, %v1547
        %v1572 = vmul.f32 %v1500, %v1548
        %v1573 = vmul.f32 %v1501, %v1549
        %v1574 = vmul.f32 %v1502, %v1550
        %v1575 = vmul.f32 %v1503, %v1551
        %v1576 = vmul.f32 %v1504, %v1552
        %v1577 = vmul.f32 %v1505, %v1553
        %v1578 = vmul.f32 %v1506, %v1554
        %v1579 = vmul.f32 %v1507, %v1555
        %v1580 = vmul.f32 %v1508, %v1556
        %v1581 = vmul.f32 %v1509, %v1557
        %v1582 = vmul.f32 %v1510, %v1558
        %v1583 = vmul.f32 %v1511, %v1559
        %v1584 = vmul.f32 %v1512, %v1560
        %v1585 = vmul.f32 %v1513, %v1561
        %v1586 = vmul.f32 %v1514, %v1562
        %v1587 = vmul.f32 %v1515, %v1563
        %v1588 = vmul.f32 %v1516, %v1564
        %v1589 = vmul.f32 %v1517, %v1565
        %v1590 = vmul.f32 %v1518, %v1566
        %v1591 = vmul.f32 %v1519, %v1567
        %v1592 = vmul.f32 %v1520, %v1568
        %v1593 = vld [vmem:[%s4 + $0x1] sm:$0x1]
        %v1594 = vlaneseq
        %v1595 = vshrl.u32 %v1594, 7
        %v1596 = vsub.s32 0, %v1595
        %v1597 = vrot.slane %v1593, %v1596
        %v1598 = vmul.f32 %v1569, %v1597
        %v1599 = vmul.f32 %v1570, %v1597
        %v1600 = vmul.f32 %v1571, %v1597
        %v1601 = vmul.f32 %v1572, %v1597
        %v1602 = vmul.f32 %v1573, %v1597
        %v1603 = vmul.f32 %v1574, %v1597
        %v1604 = vmul.f32 %v1575, %v1597
        %v1605 = vmul.f32 %v1576, %v1597
        %v1606 = vmul.f32 %v1577, %v1597
        %v1607 = vmul.f32 %v1578, %v1597
        %v1608 = vmul.f32 %v1579, %v1597
        %v1609 = vmul.f32 %v1580, %v1597
        %v1610 = vmul.f32 %v1581, %v1597
        %v1611 = vmul.f32 %v1582, %v1597
        %v1612 = vmul.f32 %v1583, %v1597
        %v1613 = vmul.f32 %v1584, %v1597
        %v1614 = vmul.f32 %v1585, %v1597
        %v1615 = vmul.f32 %v1586, %v1597
        %v1616 = vmul.f32 %v1587, %v1597
        %v1617 = vmul.f32 %v1588, %v1597
        %v1618 = vmul.f32 %v1589, %v1597
        %v1619 = vmul.f32 %v1590, %v1597
        %v1620 = vmul.f32 %v1591, %v1597
        %v1621 = vmul.f32 %v1592, %v1597
        %v1622 = vld [vmem:[%s4 + $0x2] sm:$0x1]
        %v1623 = vlaneseq
        %v1624 = vshrl.u32 %v1623, 7
        %v1625 = vsub.s32 0, %v1624
        %v1626 = vrot.slane %v1622, %v1625
        %v1627 = vadd.f32 %v1598, %v1626
        %v1628 = vadd.f32 %v1599, %v1626
        %v1629 = vadd.f32 %v1600, %v1626
        %v1630 = vadd.f32 %v1601, %v1626
        %v1631 = vadd.f32 %v1602, %v1626
        %v1632 = vadd.f32 %v1603, %v1626
        %v1633 = vadd.f32 %v1604, %v1626
        %v1634 = vadd.f32 %v1605, %v1626
        %v1635 = vadd.f32 %v1606, %v1626
        %v1636 = vadd.f32 %v1607, %v1626
        %v1637 = vadd.f32 %v1608, %v1626
        %v1638 = vadd.f32 %v1609, %v1626
        %v1639 = vadd.f32 %v1610, %v1626
        %v1640 = vadd.f32 %v1611, %v1626
        %v1641 = vadd.f32 %v1612, %v1626
        %v1642 = vadd.f32 %v1613, %v1626
        %v1643 = vadd.f32 %v1614, %v1626
        %v1644 = vadd.f32 %v1615, %v1626
        %v1645 = vadd.f32 %v1616, %v1626
        %v1646 = vadd.f32 %v1617, %v1626
        %v1647 = vadd.f32 %v1618, %v1626
        %v1648 = vadd.f32 %v1619, %v1626
        %v1649 = vadd.f32 %v1620, %v1626
        %v1650 = vadd.f32 %v1621, %v1626
        %vm1651 = vcmp.ge.f32.partialorder %v1627, 0.0
        %vm1652 = vcmp.ge.f32.partialorder %v1628, 0.0
        %vm1653 = vcmp.ge.f32.partialorder %v1629, 0.0
        %vm1654 = vcmp.ge.f32.partialorder %v1630, 0.0
        %vm1655 = vcmp.ge.f32.partialorder %v1631, 0.0
        %vm1656 = vcmp.ge.f32.partialorder %v1632, 0.0
        %vm1657 = vcmp.ge.f32.partialorder %v1633, 0.0
        %vm1658 = vcmp.ge.f32.partialorder %v1634, 0.0
        %vm1659 = vcmp.ge.f32.partialorder %v1635, 0.0
        %vm1660 = vcmp.ge.f32.partialorder %v1636, 0.0
        %vm1661 = vcmp.ge.f32.partialorder %v1637, 0.0
        %vm1662 = vcmp.ge.f32.partialorder %v1638, 0.0
        %vm1663 = vcmp.ge.f32.partialorder %v1639, 0.0
        %vm1664 = vcmp.ge.f32.partialorder %v1640, 0.0
        %vm1665 = vcmp.ge.f32.partialorder %v1641, 0.0
        %vm1666 = vcmp.ge.f32.partialorder %v1642, 0.0
        %vm1667 = vcmp.ge.f32.partialorder %v1643, 0.0
        %vm1668 = vcmp.ge.f32.partialorder %v1644, 0.0
        %vm1669 = vcmp.ge.f32.partialorder %v1645, 0.0
        %vm1670 = vcmp.ge.f32.partialorder %v1646, 0.0
        %vm1671 = vcmp.ge.f32.partialorder %v1647, 0.0
        %vm1672 = vcmp.ge.f32.partialorder %v1648, 0.0
        %vm1673 = vcmp.ge.f32.partialorder %v1649, 0.0
        %vm1674 = vcmp.ge.f32.partialorder %v1650, 0.0
        %v1675 = vmul.f32 %v1627, 0.01
        %v1676 = vmul.f32 %v1628, 0.01
        %v1677 = vmul.f32 %v1629, 0.01
        %v1678 = vmul.f32 %v1630, 0.01
        %v1679 = vmul.f32 %v1631, 0.01
        %v1680 = vmul.f32 %v1632, 0.01
        %v1681 = vmul.f32 %v1633, 0.01
        %v1682 = vmul.f32 %v1634, 0.01
        %v1683 = vmul.f32 %v1635, 0.01
        %v1684 = vmul.f32 %v1636, 0.01
        %v1685 = vmul.f32 %v1637, 0.01
        %v1686 = vmul.f32 %v1638, 0.01
        %v1687 = vmul.f32 %v1639, 0.01
        %v1688 = vmul.f32 %v1640, 0.01
        %v1689 = vmul.f32 %v1641, 0.01
        %v1690 = vmul.f32 %v1642, 0.01
        %v1691 = vmul.f32 %v1643, 0.01
        %v1692 = vmul.f32 %v1644, 0.01
        %v1693 = vmul.f32 %v1645, 0.01
        %v1694 = vmul.f32 %v1646, 0.01
        %v1695 = vmul.f32 %v1647, 0.01
        %v1696 = vmul.f32 %v1648, 0.01
        %v1697 = vmul.f32 %v1649, 0.01
        %v1698 = vmul.f32 %v1650, 0.01
        %v1699 = vsel %vm1651, %v1627, %v1675
        %v1700 = vsel %vm1652, %v1628, %v1676
        %v1701 = vsel %vm1653, %v1629, %v1677
        %v1702 = vsel %vm1654, %v1630, %v1678
        %v1703 = vsel %vm1655, %v1631, %v1679
        %v1704 = vsel %vm1656, %v1632, %v1680
        %v1705 = vsel %vm1657, %v1633, %v1681
        %v1706 = vsel %vm1658, %v1634, %v1682
        %v1707 = vsel %vm1659, %v1635, %v1683
        %v1708 = vsel %vm1660, %v1636, %v1684
        %v1709 = vsel %vm1661, %v1637, %v1685
        %v1710 = vsel %vm1662, %v1638, %v1686
        %v1711 = vsel %vm1663, %v1639, %v1687
        %v1712 = vsel %vm1664, %v1640, %v1688
        %v1713 = vsel %vm1665, %v1641, %v1689
        %v1714 = vsel %vm1666, %v1642, %v1690
        %v1715 = vsel %vm1667, %v1643, %v1691
        %v1716 = vsel %vm1668, %v1644, %v1692
        %v1717 = vsel %vm1669, %v1645, %v1693
        %v1718 = vsel %vm1670, %v1646, %v1694
        %v1719 = vsel %vm1671, %v1647, %v1695
        %v1720 = vsel %vm1672, %v1648, %v1696
        %v1721 = vsel %vm1673, %v1649, %v1697
        %v1722 = vsel %vm1674, %v1650, %v1698
        %v1723 = vld [vmem:[#allocation10] sm:$0xff]
        %v1724 = vld [vmem:[#allocation10 + $0x8] sm:$0xff]
        %v1725 = vld [vmem:[#allocation10 + $0x10] sm:$0xff]
        %v1726 = vld [vmem:[#allocation10 + $0x18] sm:$0xff]
        %v1727 = vld [vmem:[#allocation10 + $0x20] sm:$0xff]
        %v1728 = vld [vmem:[#allocation10 + $0x28] sm:$0xff]
        %v1729 = vld [vmem:[#allocation10 + $0x30] sm:$0xff]
        %v1730 = vld [vmem:[#allocation10 + $0x38] sm:$0xff]
        %v1731 = vld [vmem:[#allocation10 + $0x40] sm:$0xff]
        %v1732 = vld [vmem:[#allocation10 + $0x48] sm:$0xff]
        %v1733 = vld [vmem:[#allocation10 + $0x50] sm:$0xff]
        %v1734 = vld [vmem:[#allocation10 + $0x58] sm:$0xff]
        %v1735 = vld [vmem:[#allocation10 + $0x60] sm:$0xff]
        %v1736 = vld [vmem:[#allocation10 + $0x68] sm:$0xff]
        %v1737 = vld [vmem:[#allocation10 + $0x70] sm:$0xff]
        %v1738 = vld [vmem:[#allocation10 + $0x78] sm:$0xff]
        %v1739 = vld [vmem:[%s6] sm:$0x1]
        %v1740 = vlaneseq
        %v1741 = vshrl.u32 %v1740, 7
        %v1742 = vsub.s32 0, %v1741
        %v1743 = vrot.slane %v1739, %v1742
        %1744 = vmatprep.subr.mxu0 0.0
        %1745 = vmatpush1.msra.mxu0 %v1723
        %1746 = vmatprep.subr.mxu0 0.0
        %1747 = vmatpush1.msra.mxu0 %v1724
        %1748 = vmatprep.subr.mxu0 0.0
        %1749 = vmatpush1.msra.mxu0 %v1725
        %1750 = vmatprep.subr.mxu0 0.0
        %1751 = vmatpush1.msra.mxu0 %v1726
        %1752 = vmatprep.subr.mxu0 0.0
        %1753 = vmatpush1.msra.mxu0 %v1727
        %1754 = vmatprep.subr.mxu0 0.0
        %1755 = vmatpush1.msra.mxu0 %v1728
        %1756 = vmatprep.subr.mxu0 0.0
        %1757 = vmatpush1.msra.mxu0 %v1729
        %1758 = vmatprep.subr.mxu0 0.0
        %1759 = vmatpush1.msra.mxu0 %v1730
        %1760 = vmatprep.subr.mxu0 0.0
        %1761 = vmatpush1.msra.mxu0 %v1731
        %1762 = vmatprep.subr.mxu0 0.0
        %1763 = vmatpush1.msra.mxu0 %v1732
        %1764 = vmatprep.subr.mxu0 0.0
        %1765 = vmatpush1.msra.mxu0 %v1733
        %1766 = vmatprep.subr.mxu0 0.0
        %1767 = vmatpush1.msra.mxu0 %v1734
        %1768 = vmatprep.subr.mxu0 0.0
        %1769 = vmatpush1.msra.mxu0 %v1735
        %1770 = vmatprep.subr.mxu0 0.0
        %1771 = vmatpush1.msra.mxu0 %v1736
        %1772 = vmatprep.subr.mxu0 0.0
        %1773 = vmatpush1.msra.mxu0 %v1737
        %1774 = vmatprep.subr.mxu0 0.0
        %1775 = vmatpush1.msra.mxu0 %v1738
        %1776 = vmatprep.subr.mxu0 0.0
        %1777 = vmatpush1.msra.mxu0 0.0
        %1778 = vmatprep.subr.mxu0 0.0
        %1779 = vmatpush1.msra.mxu0 0.0
        %1780 = vmatprep.subr.mxu0 0.0
        %1781 = vmatpush1.msra.mxu0 0.0
        %1782 = vmatprep.subr.mxu0 0.0
        %1783 = vmatpush1.msra.mxu0 0.0
        %1784 = vmatprep.subr.mxu0 0.0
        %1785 = vmatpush1.msra.mxu0 0.0
        %1786 = vmatprep.subr.mxu0 0.0
        %1787 = vmatpush1.msra.mxu0 0.0
        %1788 = vmatprep.subr.mxu0 0.0
        %1789 = vmatpush1.msra.mxu0 0.0
        %1790 = vmatprep.subr.mxu0 0.0
        %1791 = vmatpush1.msra.mxu0 0.0
        %1792 = vmatprep.subr.mxu0 0.0
        %1793 = vmatpush1.msra.mxu0 0.0
        %1794 = vmatprep.subr.mxu0 0.0
        %1795 = vmatpush1.msra.mxu0 0.0
        %1796 = vmatprep.subr.mxu0 0.0
        %1797 = vmatpush1.msra.mxu0 0.0
        %1798 = vmatprep.subr.mxu0 0.0
        %1799 = vmatpush1.msra.mxu0 0.0
        %1800 = vmatprep.subr.mxu0 0.0
        %1801 = vmatpush1.msra.mxu0 0.0
        %1802 = vmatprep.subr.mxu0 0.0
        %1803 = vmatpush1.msra.mxu0 0.0
        %1804 = vmatprep.subr.mxu0 0.0
        %1805 = vmatpush1.msra.mxu0 0.0
        %1806 = vmatprep.subr.mxu0 0.0
        %1807 = vmatpush1.msra.mxu0 0.0
        %1808 = vmatprep.mubr.f32.mxu0 0.0
        %1809 = vmatmul.mubr.f32.gmra.mrb[0].mxu0 %v1699
        %v1810 = vpop.f32.mrb[0].mxu0
        %v1811 = vadd.f32 %v1743, %v1810
        %v1812 = vpop.f32.mrb[0].mxu0
        %1813 = vmatprep.mubr.f32.mxu0 0.0
        %1814 = vmatmul.mubr.f32.gmra.mrb[0].mxu0 %v1700
        %v1815 = vpop.f32.mrb[0].mxu0
        %v1816 = vadd.f32 %v1743, %v1815
        %v1817 = vpop.f32.mrb[0].mxu0
        %1818 = vmatprep.mubr.f32.mxu0 0.0
        %1819 = vmatmul.mubr.f32.gmra.mrb[0].mxu0 %v1701
        %v1820 = vpop.f32.mrb[0].mxu0
        %v1821 = vadd.f32 %v1743, %v1820
        %v1822 = vpop.f32.mrb[0].mxu0
        %1823 = vmatprep.mubr.f32.mxu0 0.0
        %1824 = vmatmul.mubr.f32.gmra.mrb[0].mxu0 %v1702
        %v1825 = vpop.f32.mrb[0].mxu0
        %v1826 = vadd.f32 %v1743, %v1825
        %v1827 = vpop.f32.mrb[0].mxu0
        %1828 = vmatprep.mubr.f32.mxu0 0.0
        %1829 = vmatmul.mubr.f32.gmra.mrb[0].mxu0 %v1703
        %v1830 = vpop.f32.mrb[0].mxu0
        %v1831 = vadd.f32 %v1743, %v1830
        %v1832 = vpop.f32.mrb[0].mxu0
        %1833 = vmatprep.mubr.f32.mxu0 0.0
        %1834 = vmatmul.mubr.f32.gmra.mrb[0].mxu0 %v1704
        %v1835 = vpop.f32.mrb[0].mxu0
        %v1836 = vadd.f32 %v1743, %v1835
        %v1837 = vpop.f32.mrb[0].mxu0
        %1838 = vmatprep.mubr.f32.mxu0 0.0
        %1839 = vmatmul.mubr.f32.gmra.mrb[0].mxu0 %v1705
        %v1840 = vpop.f32.mrb[0].mxu0
        %v1841 = vadd.f32 %v1743, %v1840
        %v1842 = vpop.f32.mrb[0].mxu0
        %1843 = vmatprep.mubr.f32.mxu0 0.0
        %1844 = vmatmul.mubr.f32.gmra.mrb[0].mxu0 %v1706
        %v1845 = vpop.f32.mrb[0].mxu0
        %v1846 = vadd.f32 %v1743, %v1845
        %v1847 = vpop.f32.mrb[0].mxu0
        %1848 = vmatprep.mubr.f32.mxu0 0.0
        %1849 = vmatmul.mubr.f32.gmra.mrb[0].mxu0 %v1707
        %v1850 = vpop.f32.mrb[0].mxu0
        %v1851 = vadd.f32 %v1743, %v1850
        %v1852 = vpop.f32.mrb[0].mxu0
        %1853 = vmatprep.mubr.f32.mxu0 0.0
        %1854 = vmatmul.mubr.f32.gmra.mrb[0].mxu0 %v1708
        %v1855 = vpop.f32.mrb[0].mxu0
        %v1856 = vadd.f32 %v1743, %v1855
        %v1857 = vpop.f32.mrb[0].mxu0
        %1858 = vmatprep.mubr.f32.mxu0 0.0
        %1859 = vmatmul.mubr.f32.gmra.mrb[0].mxu0 %v1709
        %v1860 = vpop.f32.mrb[0].mxu0
        %v1861 = vadd.f32 %v1743, %v1860
        %v1862 = vpop.f32.mrb[0].mxu0
        %1863 = vmatprep.mubr.f32.mxu0 0.0
        %1864 = vmatmul.mubr.f32.gmra.mrb[0].mxu0 %v1710
        %v1865 = vpop.f32.mrb[0].mxu0
        %v1866 = vadd.f32 %v1743, %v1865
        %v1867 = vpop.f32.mrb[0].mxu0
        %1868 = vmatprep.mubr.f32.mxu0 0.0
        %1869 = vmatmul.mubr.f32.gmra.mrb[0].mxu0 %v1711
        %v1870 = vpop.f32.mrb[0].mxu0
        %v1871 = vadd.f32 %v1743, %v1870
        %v1872 = vpop.f32.mrb[0].mxu0
        %1873 = vmatprep.mubr.f32.mxu0 0.0
        %1874 = vmatmul.mubr.f32.gmra.mrb[0].mxu0 %v1712
        %v1875 = vpop.f32.mrb[0].mxu0
        %v1876 = vadd.f32 %v1743, %v1875
        %v1877 = vpop.f32.mrb[0].mxu0
        %1878 = vmatprep.mubr.f32.mxu0 0.0
        %1879 = vmatmul.mubr.f32.gmra.mrb[0].mxu0 %v1713
        %v1880 = vpop.f32.mrb[0].mxu0
        %v1881 = vadd.f32 %v1743, %v1880
        %v1882 = vpop.f32.mrb[0].mxu0
        %1883 = vmatprep.mubr.f32.mxu0 0.0
        %1884 = vmatmul.mubr.f32.gmra.mrb[0].mxu0 %v1714
        %v1885 = vpop.f32.mrb[0].mxu0
        %v1886 = vadd.f32 %v1743, %v1885
        %v1887 = vpop.f32.mrb[0].mxu0
        %1888 = vmatprep.mubr.f32.mxu0 0.0
        %1889 = vmatmul.mubr.f32.gmra.mrb[0].mxu0 %v1715
        %v1890 = vpop.f32.mrb[0].mxu0
        %v1891 = vadd.f32 %v1743, %v1890
        %v1892 = vpop.f32.mrb[0].mxu0
        %1893 = vmatprep.mubr.f32.mxu0 0.0
        %1894 = vmatmul.mubr.f32.gmra.mrb[0].mxu0 %v1716
        %v1895 = vpop.f32.mrb[0].mxu0
        %v1896 = vadd.f32 %v1743, %v1895
        %v1897 = vpop.f32.mrb[0].mxu0
        %1898 = vmatprep.mubr.f32.mxu0 0.0
        %1899 = vmatmul.mubr.f32.gmra.mrb[0].mxu0 %v1717
        %v1900 = vpop.f32.mrb[0].mxu0
        %v1901 = vadd.f32 %v1743, %v1900
        %v1902 = vpop.f32.mrb[0].mxu0
        %1903 = vmatprep.mubr.f32.mxu0 0.0
        %1904 = vmatmul.mubr.f32.gmra.mrb[0].mxu0 %v1718
        %v1905 = vpop.f32.mrb[0].mxu0
        %v1906 = vadd.f32 %v1743, %v1905
        %v1907 = vpop.f32.mrb[0].mxu0
        %1908 = vmatprep.mubr.f32.mxu0 0.0
        %1909 = vmatmul.mubr.f32.gmra.mrb[0].mxu0 %v1719
        %v1910 = vpop.f32.mrb[0].mxu0
        %v1911 = vadd.f32 %v1743, %v1910
        %v1912 = vpop.f32.mrb[0].mxu0
        %1913 = vmatprep.mubr.f32.mxu0 0.0
        %1914 = vmatmul.mubr.f32.gmra.mrb[0].mxu0 %v1720
        %v1915 = vpop.f32.mrb[0].mxu0
        %v1916 = vadd.f32 %v1743, %v1915
        %v1917 = vpop.f32.mrb[0].mxu0
        %1918 = vmatprep.mubr.f32.mxu0 0.0
        %1919 = vmatmul.mubr.f32.gmra.mrb[0].mxu0 %v1721
        %v1920 = vpop.f32.mrb[0].mxu0
        %v1921 = vadd.f32 %v1743, %v1920
        %v1922 = vpop.f32.mrb[0].mxu0
        %1923 = vmatprep.mubr.f32.mxu0 0.0
        %1924 = vmatmul.mubr.f32.gmra.mrb[0].mxu0 %v1722
        %v1925 = vpop.f32.mrb[0].mxu0
        %v1926 = vadd.f32 %v1743, %v1925
        %v1927 = vpop.f32.mrb[0].mxu0
        %1928 = vdwg.mxu0
        %1929 = vadd.xlane.f32.xlu0 %v1811
        %v1930 = vpop.xlane.xlu0 %1929
        %1931 = vadd.xlane.f32.xlu0 %v1816
        %v1932 = vpop.xlane.xlu0 %1931
        %1933 = vadd.xlane.f32.xlu0 %v1821
        %v1934 = vpop.xlane.xlu0 %1933
        %1935 = vadd.xlane.f32.xlu0 %v1826
        %v1936 = vpop.xlane.xlu0 %1935
        %1937 = vadd.xlane.f32.xlu0 %v1831
        %v1938 = vpop.xlane.xlu0 %1937
        %1939 = vadd.xlane.f32.xlu0 %v1836
        %v1940 = vpop.xlane.xlu0 %1939
        %1941 = vadd.xlane.f32.xlu0 %v1841
        %v1942 = vpop.xlane.xlu0 %1941
        %1943 = vadd.xlane.f32.xlu0 %v1846
        %v1944 = vpop.xlane.xlu0 %1943
        %1945 = vadd.xlane.f32.xlu0 %v1851
        %v1946 = vpop.xlane.xlu0 %1945
        %1947 = vadd.xlane.f32.xlu0 %v1856
        %v1948 = vpop.xlane.xlu0 %1947
        %1949 = vadd.xlane.f32.xlu0 %v1861
        %v1950 = vpop.xlane.xlu0 %1949
        %1951 = vadd.xlane.f32.xlu0 %v1866
        %v1952 = vpop.xlane.xlu0 %1951
        %1953 = vadd.xlane.f32.xlu0 %v1871
        %v1954 = vpop.xlane.xlu0 %1953
        %1955 = vadd.xlane.f32.xlu0 %v1876
        %v1956 = vpop.xlane.xlu0 %1955
        %1957 = vadd.xlane.f32.xlu0 %v1881
        %v1958 = vpop.xlane.xlu0 %1957
        %1959 = vadd.xlane.f32.xlu0 %v1886
        %v1960 = vpop.xlane.xlu0 %1959
        %1961 = vadd.xlane.f32.xlu0 %v1891
        %v1962 = vpop.xlane.xlu0 %1961
        %1963 = vadd.xlane.f32.xlu0 %v1896
        %v1964 = vpop.xlane.xlu0 %1963
        %1965 = vadd.xlane.f32.xlu0 %v1901
        %v1966 = vpop.xlane.xlu0 %1965
        %1967 = vadd.xlane.f32.xlu0 %v1906
        %v1968 = vpop.xlane.xlu0 %1967
        %1969 = vadd.xlane.f32.xlu0 %v1911
        %v1970 = vpop.xlane.xlu0 %1969
        %1971 = vadd.xlane.f32.xlu0 %v1916
        %v1972 = vpop.xlane.xlu0 %1971
        %1973 = vadd.xlane.f32.xlu0 %v1921
        %v1974 = vpop.xlane.xlu0 %1973
        %1975 = vadd.xlane.f32.xlu0 %v1926
        %v1976 = vpop.xlane.xlu0 %1975
        %v1977 = vmul.f32 %v1930, 0.0078125
        %v1978 = vmul.f32 %v1932, 0.0078125
        %v1979 = vmul.f32 %v1934, 0.0078125
        %v1980 = vmul.f32 %v1936, 0.0078125
        %v1981 = vmul.f32 %v1938, 0.0078125
        %v1982 = vmul.f32 %v1940, 0.0078125
        %v1983 = vmul.f32 %v1942, 0.0078125
        %v1984 = vmul.f32 %v1944, 0.0078125
        %v1985 = vmul.f32 %v1946, 0.0078125
        %v1986 = vmul.f32 %v1948, 0.0078125
        %v1987 = vmul.f32 %v1950, 0.0078125
        %v1988 = vmul.f32 %v1952, 0.0078125
        %v1989 = vmul.f32 %v1954, 0.0078125
        %v1990 = vmul.f32 %v1956, 0.0078125
        %v1991 = vmul.f32 %v1958, 0.0078125
        %v1992 = vmul.f32 %v1960, 0.0078125
        %v1993 = vmul.f32 %v1962, 0.0078125
        %v1994 = vmul.f32 %v1964, 0.0078125
        %v1995 = vmul.f32 %v1966, 0.0078125
        %v1996 = vmul.f32 %v1968, 0.0078125
        %v1997 = vmul.f32 %v1970, 0.0078125
        %v1998 = vmul.f32 %v1972, 0.0078125
        %v1999 = vmul.f32 %v1974, 0.0078125
        %v2000 = vmul.f32 %v1976, 0.0078125
        %v2001 = vmul.f32 %v1811, %v1811
        %v2002 = vmul.f32 %v1816, %v1816
        %v2003 = vmul.f32 %v1821, %v1821
        %v2004 = vmul.f32 %v1826, %v1826
        %v2005 = vmul.f32 %v1831, %v1831
        %v2006 = vmul.f32 %v1836, %v1836
        %v2007 = vmul.f32 %v1841, %v1841
        %v2008 = vmul.f32 %v1846, %v1846
        %v2009 = vmul.f32 %v1851, %v1851
        %v2010 = vmul.f32 %v1856, %v1856
        %v2011 = vmul.f32 %v1861, %v1861
        %v2012 = vmul.f32 %v1866, %v1866
        %v2013 = vmul.f32 %v1871, %v1871
        %v2014 = vmul.f32 %v1876, %v1876
        %v2015 = vmul.f32 %v1881, %v1881
        %v2016 = vmul.f32 %v1886, %v1886
        %v2017 = vmul.f32 %v1891, %v1891
        %v2018 = vmul.f32 %v1896, %v1896
        %v2019 = vmul.f32 %v1901, %v1901
        %v2020 = vmul.f32 %v1906, %v1906
        %v2021 = vmul.f32 %v1911, %v1911
        %v2022 = vmul.f32 %v1916, %v1916
        %v2023 = vmul.f32 %v1921, %v1921
        %v2024 = vmul.f32 %v1926, %v1926
        %2025 = vadd.xlane.f32.xlu0 %v2001
        %v2026 = vpop.xlane.xlu0 %2025
        %2027 = vadd.xlane.f32.xlu0 %v2002
        %v2028 = vpop.xlane.xlu0 %2027
        %2029 = vadd.xlane.f32.xlu0 %v2003
        %v2030 = vpop.xlane.xlu0 %2029
        %2031 = vadd.xlane.f32.xlu0 %v2004
        %v2032 = vpop.xlane.xlu0 %2031
        %2033 = vadd.xlane.f32.xlu0 %v2005
        %v2034 = vpop.xlane.xlu0 %2033
        %2035 = vadd.xlane.f32.xlu0 %v2006
        %v2036 = vpop.xlane.xlu0 %2035
        %2037 = vadd.xlane.f32.xlu0 %v2007
        %v2038 = vpop.xlane.xlu0 %2037
        %2039 = vadd.xlane.f32.xlu0 %v2008
        %v2040 = vpop.xlane.xlu0 %2039
        %2041 = vadd.xlane.f32.xlu0 %v2009
        %v2042 = vpop.xlane.xlu0 %2041
        %2043 = vadd.xlane.f32.xlu0 %v2010
        %v2044 = vpop.xlane.xlu0 %2043
        %2045 = vadd.xlane.f32.xlu0 %v2011
        %v2046 = vpop.xlane.xlu0 %2045
        %2047 = vadd.xlane.f32.xlu0 %v2012
        %v2048 = vpop.xlane.xlu0 %2047
        %2049 = vadd.xlane.f32.xlu0 %v2013
        %v2050 = vpop.xlane.xlu0 %2049
        %2051 = vadd.xlane.f32.xlu0 %v2014
        %v2052 = vpop.xlane.xlu0 %2051
        %2053 = vadd.xlane.f32.xlu0 %v2015
        %v2054 = vpop.xlane.xlu0 %2053
        %2055 = vadd.xlane.f32.xlu0 %v2016
        %v2056 = vpop.xlane.xlu0 %2055
        %2057 = vadd.xlane.f32.xlu0 %v2017
        %v2058 = vpop.xlane.xlu0 %2057
        %2059 = vadd.xlane.f32.xlu0 %v2018
        %v2060 = vpop.xlane.xlu0 %2059
        %2061 = vadd.xlane.f32.xlu0 %v2019
        %v2062 = vpop.xlane.xlu0 %2061
        %2063 = vadd.xlane.f32.xlu0 %v2020
        %v2064 = vpop.xlane.xlu0 %2063
        %2065 = vadd.xlane.f32.xlu0 %v2021
        %v2066 = vpop.xlane.xlu0 %2065
        %2067 = vadd.xlane.f32.xlu0 %v2022
        %v2068 = vpop.xlane.xlu0 %2067
        %2069 = vadd.xlane.f32.xlu0 %v2023
        %v2070 = vpop.xlane.xlu0 %2069
        %2071 = vadd.xlane.f32.xlu0 %v2024
        %v2072 = vpop.xlane.xlu0 %2071
        %v2073 = vmul.f32 %v2026, 0.0078125
        %v2074 = vmul.f32 %v2028, 0.0078125
        %v2075 = vmul.f32 %v2030, 0.0078125
        %v2076 = vmul.f32 %v2032, 0.0078125
        %v2077 = vmul.f32 %v2034, 0.0078125
        %v2078 = vmul.f32 %v2036, 0.0078125
        %v2079 = vmul.f32 %v2038, 0.0078125
        %v2080 = vmul.f32 %v2040, 0.0078125
        %v2081 = vmul.f32 %v2042, 0.0078125
        %v2082 = vmul.f32 %v2044, 0.0078125
        %v2083 = vmul.f32 %v2046, 0.0078125
        %v2084 = vmul.f32 %v2048, 0.0078125
        %v2085 = vmul.f32 %v2050, 0.0078125
        %v2086 = vmul.f32 %v2052, 0.0078125
        %v2087 = vmul.f32 %v2054, 0.0078125
        %v2088 = vmul.f32 %v2056, 0.0078125
        %v2089 = vmul.f32 %v2058, 0.0078125
        %v2090 = vmul.f32 %v2060, 0.0078125
        %v2091 = vmul.f32 %v2062, 0.0078125
        %v2092 = vmul.f32 %v2064, 0.0078125
        %v2093 = vmul.f32 %v2066, 0.0078125
        %v2094 = vmul.f32 %v2068, 0.0078125
        %v2095 = vmul.f32 %v2070, 0.0078125
        %v2096 = vmul.f32 %v2072, 0.0078125
        %v2097 = vmul.f32 %v1977, %v1977
        %v2098 = vmul.f32 %v1978, %v1978
        %v2099 = vmul.f32 %v1979, %v1979
        %v2100 = vmul.f32 %v1980, %v1980
        %v2101 = vmul.f32 %v1981, %v1981
        %v2102 = vmul.f32 %v1982, %v1982
        %v2103 = vmul.f32 %v1983, %v1983
        %v2104 = vmul.f32 %v1984, %v1984
        %v2105 = vmul.f32 %v1985, %v1985
        %v2106 = vmul.f32 %v1986, %v1986
        %v2107 = vmul.f32 %v1987, %v1987
        %v2108 = vmul.f32 %v1988, %v1988
        %v2109 = vmul.f32 %v1989, %v1989
        %v2110 = vmul.f32 %v1990, %v1990
        %v2111 = vmul.f32 %v1991, %v1991
        %v2112 = vmul.f32 %v1992, %v1992
        %v2113 = vmul.f32 %v1993, %v1993
        %v2114 = vmul.f32 %v1994, %v1994
        %v2115 = vmul.f32 %v1995, %v1995
        %v2116 = vmul.f32 %v1996, %v1996
        %v2117 = vmul.f32 %v1997, %v1997
        %v2118 = vmul.f32 %v1998, %v1998
        %v2119 = vmul.f32 %v1999, %v1999
        %v2120 = vmul.f32 %v2000, %v2000
        %v2121 = vsub.f32 %v2073, %v2097
        %v2122 = vsub.f32 %v2074, %v2098
        %v2123 = vsub.f32 %v2075, %v2099
        %v2124 = vsub.f32 %v2076, %v2100
        %v2125 = vsub.f32 %v2077, %v2101
        %v2126 = vsub.f32 %v2078, %v2102
        %v2127 = vsub.f32 %v2079, %v2103
        %v2128 = vsub.f32 %v2080, %v2104
        %v2129 = vsub.f32 %v2081, %v2105
        %v2130 = vsub.f32 %v2082, %v2106
        %v2131 = vsub.f32 %v2083, %v2107
        %v2132 = vsub.f32 %v2084, %v2108
        %v2133 = vsub.f32 %v2085, %v2109
        %v2134 = vsub.f32 %v2086, %v2110
        %v2135 = vsub.f32 %v2087, %v2111
        %v2136 = vsub.f32 %v2088, %v2112
        %v2137 = vsub.f32 %v2089, %v2113
        %v2138 = vsub.f32 %v2090, %v2114
        %v2139 = vsub.f32 %v2091, %v2115
        %v2140 = vsub.f32 %v2092, %v2116
        %v2141 = vsub.f32 %v2093, %v2117
        %v2142 = vsub.f32 %v2094, %v2118
        %v2143 = vsub.f32 %v2095, %v2119
        %v2144 = vsub.f32 %v2096, %v2120
        %v2145 = vmax.f32 %v2121, 0.0
        %v2146 = vmax.f32 %v2122, 0.0
        %v2147 = vmax.f32 %v2123, 0.0
        %v2148 = vmax.f32 %v2124, 0.0
        %v2149 = vmax.f32 %v2125, 0.0
        %v2150 = vmax.f32 %v2126, 0.0
        %v2151 = vmax.f32 %v2127, 0.0
        %v2152 = vmax.f32 %v2128, 0.0
        %v2153 = vmax.f32 %v2129, 0.0
        %v2154 = vmax.f32 %v2130, 0.0
        %v2155 = vmax.f32 %v2131, 0.0
        %v2156 = vmax.f32 %v2132, 0.0
        %v2157 = vmax.f32 %v2133, 0.0
        %v2158 = vmax.f32 %v2134, 0.0
        %v2159 = vmax.f32 %v2135, 0.0
        %v2160 = vmax.f32 %v2136, 0.0
        %v2161 = vmax.f32 %v2137, 0.0
        %v2162 = vmax.f32 %v2138, 0.0
        %v2163 = vmax.f32 %v2139, 0.0
        %v2164 = vmax.f32 %v2140, 0.0
        %v2165 = vmax.f32 %v2141, 0.0
        %v2166 = vmax.f32 %v2142, 0.0
        %v2167 = vmax.f32 %v2143, 0.0
        %v2168 = vmax.f32 %v2144, 0.0
        %v2169 = vsub.f32 %v1811, %v1977
        %v2170 = vsub.f32 %v1816, %v1978
        %v2171 = vsub.f32 %v1821, %v1979
        %v2172 = vsub.f32 %v1826, %v1980
        %v2173 = vsub.f32 %v1831, %v1981
        %v2174 = vsub.f32 %v1836, %v1982
        %v2175 = vsub.f32 %v1841, %v1983
        %v2176 = vsub.f32 %v1846, %v1984
        %v2177 = vsub.f32 %v1851, %v1985
        %v2178 = vsub.f32 %v1856, %v1986
        %v2179 = vsub.f32 %v1861, %v1987
        %v2180 = vsub.f32 %v1866, %v1988
        %v2181 = vsub.f32 %v1871, %v1989
        %v2182 = vsub.f32 %v1876, %v1990
        %v2183 = vsub.f32 %v1881, %v1991
        %v2184 = vsub.f32 %v1886, %v1992
        %v2185 = vsub.f32 %v1891, %v1993
        %v2186 = vsub.f32 %v1896, %v1994
        %v2187 = vsub.f32 %v1901, %v1995
        %v2188 = vsub.f32 %v1906, %v1996
        %v2189 = vsub.f32 %v1911, %v1997
        %v2190 = vsub.f32 %v1916, %v1998
        %v2191 = vsub.f32 %v1921, %v1999
        %v2192 = vsub.f32 %v1926, %v2000
        %v2193 = vadd.f32 %v2145, 1e-05
        %v2194 = vadd.f32 %v2146, 1e-05
        %v2195 = vadd.f32 %v2147, 1e-05
        %v2196 = vadd.f32 %v2148, 1e-05
        %v2197 = vadd.f32 %v2149, 1e-05
        %v2198 = vadd.f32 %v2150, 1e-05
        %v2199 = vadd.f32 %v2151, 1e-05
        %v2200 = vadd.f32 %v2152, 1e-05
        %v2201 = vadd.f32 %v2153, 1e-05
        %v2202 = vadd.f32 %v2154, 1e-05
        %v2203 = vadd.f32 %v2155, 1e-05
        %v2204 = vadd.f32 %v2156, 1e-05
        %v2205 = vadd.f32 %v2157, 1e-05
        %v2206 = vadd.f32 %v2158, 1e-05
        %v2207 = vadd.f32 %v2159, 1e-05
        %v2208 = vadd.f32 %v2160, 1e-05
        %v2209 = vadd.f32 %v2161, 1e-05
        %v2210 = vadd.f32 %v2162, 1e-05
        %v2211 = vadd.f32 %v2163, 1e-05
        %v2212 = vadd.f32 %v2164, 1e-05
        %v2213 = vadd.f32 %v2165, 1e-05
        %v2214 = vadd.f32 %v2166, 1e-05
        %v2215 = vadd.f32 %v2167, 1e-05
        %v2216 = vadd.f32 %v2168, 1e-05
        %v2217 = vrsqrt.pop %v2193
        %v2218 = vrsqrt.pop %v2194
        %v2219 = vrsqrt.pop %v2195
        %v2220 = vrsqrt.pop %v2196
        %v2221 = vrsqrt.pop %v2197
        %v2222 = vrsqrt.pop %v2198
        %v2223 = vrsqrt.pop %v2199
        %v2224 = vrsqrt.pop %v2200
        %v2225 = vrsqrt.pop %v2201
        %v2226 = vrsqrt.pop %v2202
        %v2227 = vrsqrt.pop %v2203
        %v2228 = vrsqrt.pop %v2204
        %v2229 = vrsqrt.pop %v2205
        %v2230 = vrsqrt.pop %v2206
        %v2231 = vrsqrt.pop %v2207
        %v2232 = vrsqrt.pop %v2208
        %v2233 = vrsqrt.pop %v2209
        %v2234 = vrsqrt.pop %v2210
        %v2235 = vrsqrt.pop %v2211
        %v2236 = vrsqrt.pop %v2212
        %v2237 = vrsqrt.pop %v2213
        %v2238 = vrsqrt.pop %v2214
        %v2239 = vrsqrt.pop %v2215
        %v2240 = vrsqrt.pop %v2216
        %v2241 = vmul.f32 %v2169, %v2217
        %v2242 = vmul.f32 %v2170, %v2218
        %v2243 = vmul.f32 %v2171, %v2219
        %v2244 = vmul.f32 %v2172, %v2220
        %v2245 = vmul.f32 %v2173, %v2221
        %v2246 = vmul.f32 %v2174, %v2222
        %v2247 = vmul.f32 %v2175, %v2223
        %v2248 = vmul.f32 %v2176, %v2224
        %v2249 = vmul.f32 %v2177, %v2225
        %v2250 = vmul.f32 %v2178, %v2226
        %v2251 = vmul.f32 %v2179, %v2227
        %v2252 = vmul.f32 %v2180, %v2228
        %v2253 = vmul.f32 %v2181, %v2229
        %v2254 = vmul.f32 %v2182, %v2230
        %v2255 = vmul.f32 %v2183, %v2231
        %v2256 = vmul.f32 %v2184, %v2232
        %v2257 = vmul.f32 %v2185, %v2233
        %v2258 = vmul.f32 %v2186, %v2234
        %v2259 = vmul.f32 %v2187, %v2235
        %v2260 = vmul.f32 %v2188, %v2236
        %v2261 = vmul.f32 %v2189, %v2237
        %v2262 = vmul.f32 %v2190, %v2238
        %v2263 = vmul.f32 %v2191, %v2239
        %v2264 = vmul.f32 %v2192, %v2240
        %v2265 = vld [vmem:[%s6 + $0x1] sm:$0x1]
        %v2266 = vlaneseq
        %v2267 = vshrl.u32 %v2266, 7
        %v2268 = vsub.s32 0, %v2267
        %v2269 = vrot.slane %v2265, %v2268
        %v2270 = vmul.f32 %v2241, %v2269
        %v2271 = vmul.f32 %v2242, %v2269
        %v2272 = vmul.f32 %v2243, %v2269
        %v2273 = vmul.f32 %v2244, %v2269
        %v2274 = vmul.f32 %v2245, %v2269
        %v2275 = vmul.f32 %v2246, %v2269
        %v2276 = vmul.f32 %v2247, %v2269
        %v2277 = vmul.f32 %v2248, %v2269
        %v2278 = vmul.f32 %v2249, %v2269
        %v2279 = vmul.f32 %v2250, %v2269
        %v2280 = vmul.f32 %v2251, %v2269
        %v2281 = vmul.f32 %v2252, %v2269
        %v2282 = vmul.f32 %v2253, %v2269
        %v2283 = vmul.f32 %v2254, %v2269
        %v2284 = vmul.f32 %v2255, %v2269
        %v2285 = vmul.f32 %v2256, %v2269
        %v2286 = vmul.f32 %v2257, %v2269
        %v2287 = vmul.f32 %v2258, %v2269
        %v2288 = vmul.f32 %v2259, %v2269
        %v2289 = vmul.f32 %v2260, %v2269
        %v2290 = vmul.f32 %v2261, %v2269
        %v2291 = vmul.f32 %v2262, %v2269
        %v2292 = vmul.f32 %v2263, %v2269
        %v2293 = vmul.f32 %v2264, %v2269
        %v2294 = vld [vmem:[%s6 + $0x2] sm:$0x1]
        %v2295 = vlaneseq
        %v2296 = vshrl.u32 %v2295, 7
        %v2297 = vsub.s32 0, %v2296
        %v2298 = vrot.slane %v2294, %v2297
        %v2299 = vadd.f32 %v2270, %v2298
        %v2300 = vadd.f32 %v2271, %v2298
        %v2301 = vadd.f32 %v2272, %v2298
        %v2302 = vadd.f32 %v2273, %v2298
        %v2303 = vadd.f32 %v2274, %v2298
        %v2304 = vadd.f32 %v2275, %v2298
        %v2305 = vadd.f32 %v2276, %v2298
        %v2306 = vadd.f32 %v2277, %v2298
        %v2307 = vadd.f32 %v2278, %v2298
        %v2308 = vadd.f32 %v2279, %v2298
        %v2309 = vadd.f32 %v2280, %v2298
        %v2310 = vadd.f32 %v2281, %v2298
        %v2311 = vadd.f32 %v2282, %v2298
        %v2312 = vadd.f32 %v2283, %v2298
        %v2313 = vadd.f32 %v2284, %v2298
        %v2314 = vadd.f32 %v2285, %v2298
        %v2315 = vadd.f32 %v2286, %v2298
        %v2316 = vadd.f32 %v2287, %v2298
        %v2317 = vadd.f32 %v2288, %v2298
        %v2318 = vadd.f32 %v2289, %v2298
        %v2319 = vadd.f32 %v2290, %v2298
        %v2320 = vadd.f32 %v2291, %v2298
        %v2321 = vadd.f32 %v2292, %v2298
        %v2322 = vadd.f32 %v2293, %v2298
        %vm2323 = vcmp.ge.f32.partialorder %v2299, 0.0
        %vm2324 = vcmp.ge.f32.partialorder %v2300, 0.0
        %vm2325 = vcmp.ge.f32.partialorder %v2301, 0.0
        %vm2326 = vcmp.ge.f32.partialorder %v2302, 0.0
        %vm2327 = vcmp.ge.f32.partialorder %v2303, 0.0
        %vm2328 = vcmp.ge.f32.partialorder %v2304, 0.0
        %vm2329 = vcmp.ge.f32.partialorder %v2305, 0.0
        %vm2330 = vcmp.ge.f32.partialorder %v2306, 0.0
        %vm2331 = vcmp.ge.f32.partialorder %v2307, 0.0
        %vm2332 = vcmp.ge.f32.partialorder %v2308, 0.0
        %vm2333 = vcmp.ge.f32.partialorder %v2309, 0.0
        %vm2334 = vcmp.ge.f32.partialorder %v2310, 0.0
        %vm2335 = vcmp.ge.f32.partialorder %v2311, 0.0
        %vm2336 = vcmp.ge.f32.partialorder %v2312, 0.0
        %vm2337 = vcmp.ge.f32.partialorder %v2313, 0.0
        %vm2338 = vcmp.ge.f32.partialorder %v2314, 0.0
        %vm2339 = vcmp.ge.f32.partialorder %v2315, 0.0
        %vm2340 = vcmp.ge.f32.partialorder %v2316, 0.0
        %vm2341 = vcmp.ge.f32.partialorder %v2317, 0.0
        %vm2342 = vcmp.ge.f32.partialorder %v2318, 0.0
        %vm2343 = vcmp.ge.f32.partialorder %v2319, 0.0
        %vm2344 = vcmp.ge.f32.partialorder %v2320, 0.0
        %vm2345 = vcmp.ge.f32.partialorder %v2321, 0.0
        %vm2346 = vcmp.ge.f32.partialorder %v2322, 0.0
        %v2347 = vmul.f32 %v2299, 0.01
        %v2348 = vmul.f32 %v2300, 0.01
        %v2349 = vmul.f32 %v2301, 0.01
        %v2350 = vmul.f32 %v2302, 0.01
        %v2351 = vmul.f32 %v2303, 0.01
        %v2352 = vmul.f32 %v2304, 0.01
        %v2353 = vmul.f32 %v2305, 0.01
        %v2354 = vmul.f32 %v2306, 0.01
        %v2355 = vmul.f32 %v2307, 0.01
        %v2356 = vmul.f32 %v2308, 0.01
        %v2357 = vmul.f32 %v2309, 0.01
        %v2358 = vmul.f32 %v2310, 0.01
        %v2359 = vmul.f32 %v2311, 0.01
        %v2360 = vmul.f32 %v2312, 0.01
        %v2361 = vmul.f32 %v2313, 0.01
        %v2362 = vmul.f32 %v2314, 0.01
        %v2363 = vmul.f32 %v2315, 0.01
        %v2364 = vmul.f32 %v2316, 0.01
        %v2365 = vmul.f32 %v2317, 0.01
        %v2366 = vmul.f32 %v2318, 0.01
        %v2367 = vmul.f32 %v2319, 0.01
        %v2368 = vmul.f32 %v2320, 0.01
        %v2369 = vmul.f32 %v2321, 0.01
        %v2370 = vmul.f32 %v2322, 0.01
        %v2371 = vsel %vm2323, %v2299, %v2347
        %v2372 = vsel %vm2324, %v2300, %v2348
        %v2373 = vsel %vm2325, %v2301, %v2349
        %v2374 = vsel %vm2326, %v2302, %v2350
        %v2375 = vsel %vm2327, %v2303, %v2351
        %v2376 = vsel %vm2328, %v2304, %v2352
        %v2377 = vsel %vm2329, %v2305, %v2353
        %v2378 = vsel %vm2330, %v2306, %v2354
        %v2379 = vsel %vm2331, %v2307, %v2355
        %v2380 = vsel %vm2332, %v2308, %v2356
        %v2381 = vsel %vm2333, %v2309, %v2357
        %v2382 = vsel %vm2334, %v2310, %v2358
        %v2383 = vsel %vm2335, %v2311, %v2359
        %v2384 = vsel %vm2336, %v2312, %v2360
        %v2385 = vsel %vm2337, %v2313, %v2361
        %v2386 = vsel %vm2338, %v2314, %v2362
        %v2387 = vsel %vm2339, %v2315, %v2363
        %v2388 = vsel %vm2340, %v2316, %v2364
        %v2389 = vsel %vm2341, %v2317, %v2365
        %v2390 = vsel %vm2342, %v2318, %v2366
        %v2391 = vsel %vm2343, %v2319, %v2367
        %v2392 = vsel %vm2344, %v2320, %v2368
        %v2393 = vsel %vm2345, %v2321, %v2369
        %v2394 = vsel %vm2346, %v2322, %v2370
        %2395 = vst [vmem:[%s352] sm:$0xff] %v2371
        %2396 = vst [vmem:[%s352 + $0x8] sm:$0xff] %v2372
        %2397 = vst [vmem:[%s352 + $0x10] sm:$0xff] %v2373
        %2398 = vst [vmem:[%s352 + $0x18] sm:$0xff] %v2374
        %2399 = vst [vmem:[%s352 + $0x20] sm:$0xff] %v2375
        %2400 = vst [vmem:[%s352 + $0x28] sm:$0xff] %v2376
        %2401 = vst [vmem:[%s352 + $0x30] sm:$0xff] %v2377
        %2402 = vst [vmem:[%s352 + $0x38] sm:$0xff] %v2378
        %2403 = vst [vmem:[%s352 + $0x40] sm:$0xff] %v2379
        %2404 = vst [vmem:[%s352 + $0x48] sm:$0xff] %v2380
        %2405 = vst [vmem:[%s352 + $0x50] sm:$0xff] %v2381
        %2406 = vst [vmem:[%s352 + $0x58] sm:$0xff] %v2382
        %2407 = vst [vmem:[%s352 + $0x60] sm:$0xff] %v2383
        %2408 = vst [vmem:[%s352 + $0x68] sm:$0xff] %v2384
        %2409 = vst [vmem:[%s352 + $0x70] sm:$0xff] %v2385
        %2410 = vst [vmem:[%s352 + $0x78] sm:$0xff] %v2386
        %2411 = vst [vmem:[%s352 + $0x80] sm:$0xff] %v2387
        %2412 = vst [vmem:[%s352 + $0x88] sm:$0xff] %v2388
        %2413 = vst [vmem:[%s352 + $0x90] sm:$0xff] %v2389
        %2414 = vst [vmem:[%s352 + $0x98] sm:$0xff] %v2390
        %2415 = vst [vmem:[%s352 + $0xa0] sm:$0xff] %v2391
        %2416 = vst [vmem:[%s352 + $0xa8] sm:$0xff] %v2392
        %2417 = vst [vmem:[%s352 + $0xb0] sm:$0xff] %v2393
        %2418 = vst [vmem:[%s352 + $0xb8] sm:$0xff] %v2394
        %s2419 = sand.u32 %s186, 1
        %s2420 = scalar_lea.sflag [#allocation4], %s2419
        %s2421 = sand.u32 %s186, 1
        %s2422 = smul.addr %s2421, 192
        %s2423 = scalar_lea.vmem [#allocation11], %s2422
        // Predicated region
        $region69: #{fc_stack_forward.1} parent=47 // pred_check
          %p2424 = pneg %p196
        $region70: #{fc_stack_forward.1} parent=47 // pred_check_branch
          %2426 = sbr.rel (%p2424) target = $region72
        $region71: #{fc_stack_forward.1} parent=47 // pred_region
          %s2427 = smul.u32 24, %s26
          %s2429 = ssub.s32 3072, 3072
          %2430 = vsyncadd %s2420, %s2429
          %s2431 = smul.addr %s2427, 128
          %s2432 = scalar_lea.hbm %s7, %s2431
          %s2433 = sshll.u32 %s2423, 4
          %s2434 = int_to_ptr.vmem [resolvable:$true] %s2433
          %2439 = dma.vmem_to_hbm [thread:$0]  %s2434, 3072, %s2432, %s2420, 128, 128, 8
        $region72: #{fc_stack_forward.1} parent=47 // pred_fallthru
          _
      $region48: #{fc_stack_forward.1} parent=5 // pred_fallthru
        _
      %p2440 = scmp.le.s32.totalorder 2, %s21
      // Predicated region
      $region73: #{fc_stack_forward.1} parent=5 // pred_check
        %p2441 = pneg %p2440
      $region74: #{fc_stack_forward.1} parent=5 // pred_check_branch
        %2443 = sbr.rel (%p2441) target = $region76
      $region75: #{fc_stack_forward.1} parent=5 // pred_region
        %s2444 = ssub.s32 %s21, 2
        // Predicated region
        $region77: #{fc_stack_forward.1} parent=75 // pred_check
          %p2445 = pneg %p202
        $region78: #{fc_stack_forward.1} parent=75 // pred_check_branch
          %2447 = sbr.rel (%p2445) target = $region80
        $region79: #{fc_stack_forward.1} parent=75 // pred_region
          %s2448 = sand.u32 %s187, 1
          %s2449 = scalar_lea.sflag [#allocation4], %s2448
          %s2450 = sand.u32 %s187, 1
          %s2451 = smul.addr %s2450, 192
          %s2452 = scalar_lea.vmem [#allocation11], %s2451
          %2453 = dma.done %s2449, 3072
        $region80: #{fc_stack_forward.1} parent=75 // pred_fallthru
          _
      $region76: #{fc_stack_forward.1} parent=5 // pred_fallthru
        _
    $region6: #{fc_stack_forward.1} parent=1 // loop_footer
      %s25 = sadd.s32 1, %s21
    $region7: #{fc_stack_forward.1} parent=1 // loop_footer_branch
      %20 = sbr.rel target = $region3
    $region8: #{fc_stack_forward.1} parent=1 // loop_exit
      _
    %2454 = vsyncpa [#allocation3], 1
    %s2455 = scalar_lea.sflag [#allocation3], 1
    %2456 = vsyncpa %s2455, 1
    %2457 = vsyncpa [#allocation6], 1
    %2458 = vsyncpa [#allocation9], 1
    %2459 = vsyncpa [#allocation4], 1
    %s2460 = scalar_lea.sflag [#allocation4], 1
    %2461 = vsyncpa %s2460, 1

</llo_original>
